<compile_context>
chip_gen: v7x
topology: tpu7x:2x2x1
jax: 0.10.0
libtpu: 0.0.40
codegen_flags: <defaults>
</compile_context>

<pallas_src>
import numpy as np
import jax
import jax.numpy as jnp
from jax.experimental import pallas as pl
from jax.experimental.pallas import tpu as pltpu

LANE = 128       # all feature widths padded to one full lane tile
G_PAD = 8        # graph count padded to one full sublane tile
N_GCN = 6        # GCN layers
N_LAYERS = 8     # 6 GCN + 2 linear


# ----------------------------------------------------------------------------
# Fused Pallas kernel: entire forward pass in one invocation
# ----------------------------------------------------------------------------
def fused_net_kernel(a_ref, x_ref, m_ref, w_ref, b_ref, o_ref):
    a = a_ref[...]                                    # [N, N] normalized adjacency
    h = x_ref[...]                                    # [N, 128] zero-padded features

    # 6 x (GCNConv + relu):  relu( (A_hat @ H) @ W_l + b_l )
    for l in range(N_GCN):
        ah = jnp.dot(a, h, preferred_element_type=jnp.float32)          # [N, 128]
        h = jnp.dot(ah, w_ref[l], preferred_element_type=jnp.float32)   # [N, 128]
        h = jnp.maximum(h + b_ref[l:l + 1, :], 0.0)

    # scatter_max over nodes per graph, vectorized (single reduce + one store).
    # h >= 0 after relu, so masking by multiplication (identity 0) equals the
    # -inf-fill masked max and keeps padded graph rows finite.
    m = m_ref[...]                                    # [N, G_PAD] one-hot membership
    pooled = jnp.max(m[:, :, None] * h[:, None, :], axis=0)             # [G_PAD, 128]

    # linear1 + relu
    h2 = jnp.dot(pooled, w_ref[6], preferred_element_type=jnp.float32)
    h2 = jnp.maximum(h2 + b_ref[6:7, :], 0.0)

    # linear2 (logits); lane-dense [G_PAD, 128] store, real part is [:G, :10]
    o_ref[...] = jnp.dot(h2, w_ref[7], preferred_element_type=jnp.float32) + b_ref[7:8, :]


# ----------------------------------------------------------------------------
# pallas_call wrapper
# ----------------------------------------------------------------------------
def _spec(shape):
    nd = len(shape)
    return pl.BlockSpec(shape, lambda i, nd=nd: (0,) * nd)


def net_forward(x_pad, a_hat, mask_pad, w_all, b_all, num_graphs, num_classes):
    out_pad = pl.pallas_call(
        fused_net_kernel,
        grid=(1,),
        in_specs=[_spec(a_hat.shape), _spec(x_pad.shape), _spec(mask_pad.shape),
                  _spec(w_all.shape), _spec(b_all.shape)],
        out_specs=_spec((G_PAD, LANE)),
        out_shape=jax.ShapeDtypeStruct((G_PAD, LANE), jnp.float32),
        compiler_params=pltpu.CompilerParams(
            dimension_semantics=("arbitrary",)),
    )(a_hat, x_pad, mask_pad, w_all, b_all)
    return out_pad[:num_graphs, :num_classes]


# ----------------------------------------------------------------------------
# Host glue: normalized adjacency, pooling mask, parameters, packing
# ----------------------------------------------------------------------------
def build_normalized_adjacency(edge_index, num_nodes):
    # A_hat = D^-1/2 (A + I) D^-1/2, with A[i, j] = 1 if edge j -> i
    a = np.zeros((num_nodes, num_nodes), dtype=np.float32)
    src, dst = np.asarray(edge_index)
    a[dst, src] = 1.0
    a = a + np.eye(num_nodes, dtype=np.float32)  # self-loops
    deg = a.sum(axis=1)
    d_inv_sqrt = 1.0 / np.sqrt(np.maximum(deg, 1e-12))
    a_hat = d_inv_sqrt[:, None] * a * d_inv_sqrt[None, :]
    return jnp.asarray(a_hat, dtype=jnp.float32)


def build_batch_mask(batch, num_graphs, g_pad):
    batch = np.asarray(batch)
    mask = np.zeros((batch.shape[0], g_pad), dtype=np.float32)
    mask[np.arange(batch.shape[0]), batch] = 1.0
    assert num_graphs <= g_pad
    return jnp.asarray(mask)  # [N, G_PAD]


def init_params(key):
    gcn_dims = [(2, 16), (16, 32), (32, 48), (48, 64), (64, 96), (96, 128)]
    lin_dims = [(128, 64), (64, 10)]
    params = {"gcn": [], "lin": []}
    for f_in, f_out in gcn_dims:
        key, kw = jax.random.split(key)
        scale = jnp.sqrt(2.0 / (f_in + f_out))  # glorot-like
        w = scale * jax.random.normal(kw, (f_in, f_out), dtype=jnp.float32)
        b = jnp.zeros((f_out,), dtype=jnp.float32)
        params["gcn"].append((w, b))
    for f_in, f_out in lin_dims:
        key, kw, kb = jax.random.split(key, 3)
        bound = 1.0 / jnp.sqrt(float(f_in))
        w = jax.random.uniform(kw, (f_in, f_out), dtype=jnp.float32,
                               minval=-bound, maxval=bound)  # stored [in, out]
        b = jax.random.uniform(kb, (f_out,), dtype=jnp.float32,
                               minval=-bound, maxval=bound)
        params["lin"].append((w, b))
    return params


def pack_params(params):
    """Zero-pad every layer to [128, 128] / [128] and stack into one buffer."""
    layers = params["gcn"] + params["lin"]
    assert len(layers) == N_LAYERS
    w_all = np.zeros((N_LAYERS, LANE, LANE), dtype=np.float32)
    b_all = np.zeros((N_LAYERS, LANE), dtype=np.float32)
    for i, (w, b) in enumerate(layers):
        w = np.asarray(w)
        b = np.asarray(b)
        w_all[i, :w.shape[0], :w.shape[1]] = w
        b_all[i, :b.shape[0]] = b
    return jnp.asarray(w_all), jnp.asarray(b_all)


if __name__ == "__main__":
    key = jax.random.PRNGKey(0)

    # Two ring graphs of 8 nodes each -> N = 16 nodes, 2 input features.
    nodes_per_graph = 8
    num_graphs = 2
    num_nodes = nodes_per_graph * num_graphs
    num_classes = 10

    src_list, dst_list = [], []
    for g in range(num_graphs):
        off = g * nodes_per_graph
        for i in range(nodes_per_graph):
            j = (i + 1) % nodes_per_graph
            src_list += [off + i, off + j]   # undirected: both directions
            dst_list += [off + j, off + i]
    edge_index = np.stack([np.array(src_list), np.array(dst_list)])  # [2, 32]
    batch = np.repeat(np.arange(num_graphs), nodes_per_graph)        # [16]

    key, kx = jax.random.split(key)
    x = jax.random.normal(kx, (num_nodes, 2), dtype=jnp.float32)
    x_pad = jnp.zeros((num_nodes, LANE), dtype=jnp.float32).at[:, :2].set(x)

    a_hat = build_normalized_adjacency(edge_index, num_nodes)
    mask_pad = build_batch_mask(batch, num_graphs, G_PAD)
    params = init_params(key)
    w_all, b_all = pack_params(params)

    out = net_forward(x_pad, a_hat, mask_pad, w_all, b_all,
                      num_graphs, num_classes)
    out = jax.block_until_ready(out)
    assert out.shape == (num_graphs, num_classes)
    assert jnp.all(jnp.isfinite(out))
    print("KERNEL_OK")
</pallas_src>

<mosaic_0001>
module attributes {stable_mosaic.version = 11 : i64} {
  func.func @fused_net_kernel(%arg0: i32, %arg1: memref<16x16xf32, #tpu.memory_space<vmem>>, %arg2: memref<16x128xf32, #tpu.memory_space<vmem>>, %arg3: memref<16x8xf32, #tpu.memory_space<vmem>>, %arg4: memref<8x128x128xf32, #tpu.memory_space<vmem>>, %arg5: memref<8x128xf32, #tpu.memory_space<vmem>>, %arg6: memref<8x128xf32, #tpu.memory_space<vmem>>) attributes {dimension_semantics = [#tpu.dimension_semantics<arbitrary>], iteration_bounds = array<i64: 1>, scalar_prefetch = 0 : i64, scratch_operands = 0 : i64, tpu.core_type = #tpu.core_type<tc>, window_params = [{pipeline_mode = #tpu.pipeline_mode<synchronous>, transform_indices = @transform_0, window_bounds = array<i64: 16, 16>}, {pipeline_mode = #tpu.pipeline_mode<synchronous>, transform_indices = @transform_1, window_bounds = array<i64: 16, 128>}, {pipeline_mode = #tpu.pipeline_mode<synchronous>, transform_indices = @transform_2, window_bounds = array<i64: 16, 8>}, {pipeline_mode = #tpu.pipeline_mode<synchronous>, transform_indices = @transform_3, window_bounds = array<i64: 8, 128, 128>}, {pipeline_mode = #tpu.pipeline_mode<synchronous>, transform_indices = @transform_4, window_bounds = array<i64: 8, 128>}, {pipeline_mode = #tpu.pipeline_mode<synchronous>, transform_indices = @transform_5, window_bounds = array<i64: 8, 128>}]} {
    %c0 = arith.constant 0 : index
    %c0_0 = arith.constant 0 : index
    %0 = vector.load %arg1[%c0, %c0_0] : memref<16x16xf32, #tpu.memory_space<vmem>>, vector<16x16xf32>
    %c0_1 = arith.constant 0 : index
    %c0_2 = arith.constant 0 : index
    %1 = vector.load %arg2[%c0_1, %c0_2] : memref<16x128xf32, #tpu.memory_space<vmem>>, vector<16x128xf32>
    %cst = arith.constant dense<0.000000e+00> : vector<16x128xf32>
    %2 = tpu.matmul %0, %1, %cst {dimension_numbers = #tpu.dot_dimension_numbers<[1], [0], [0], [1], [0, 0, 1, 1], [], []>} : vector<16x16xf32>, vector<16x128xf32>, vector<16x128xf32> -> vector<16x128xf32>
    %c0_3 = arith.constant 0 : index
    %c0_4 = arith.constant 0 : index
    %c0_5 = arith.constant 0 : index
    %3 = vector.load %arg4[%c0_3, %c0_4, %c0_5] : memref<8x128x128xf32, #tpu.memory_space<vmem>>, vector<1x128x128xf32>
    %4 = vector.shape_cast %3 : vector<1x128x128xf32> to vector<128x128xf32>
    %cst_6 = arith.constant dense<0.000000e+00> : vector<16x128xf32>
    %5 = tpu.matmul %2, %4, %cst_6 {dimension_numbers = #tpu.dot_dimension_numbers<[1], [0], [0], [1], [0, 0, 1, 1], [], []>} : vector<16x128xf32>, vector<128x128xf32>, vector<16x128xf32> -> vector<16x128xf32>
    %c0_7 = arith.constant 0 : index
    %c0_8 = arith.constant 0 : index
    %6 = vector.load %arg5[%c0_7, %c0_8] : memref<8x128xf32, #tpu.memory_space<vmem>>, vector<1x128xf32>
    %7 = vector.broadcast %6 : vector<1x128xf32> to vector<16x128xf32>
    %8 = arith.addf %5, %7 : vector<16x128xf32>
    %cst_9 = arith.constant 0.000000e+00 : f32
    %9 = vector.broadcast %cst_9 : f32 to vector<16x128xf32>
    %10 = arith.maximumf %8, %9 : vector<16x128xf32>
    %cst_10 = arith.constant dense<0.000000e+00> : vector<16x128xf32>
    %11 = tpu.matmul %0, %10, %cst_10 {dimension_numbers = #tpu.dot_dimension_numbers<[1], [0], [0], [1], [0, 0, 1, 1], [], []>} : vector<16x16xf32>, vector<16x128xf32>, vector<16x128xf32> -> vector<16x128xf32>
    %c1 = arith.constant 1 : index
    %c0_11 = arith.constant 0 : index
    %c0_12 = arith.constant 0 : index
    %12 = vector.load %arg4[%c1, %c0_11, %c0_12] : memref<8x128x128xf32, #tpu.memory_space<vmem>>, vector<1x128x128xf32>
    %13 = vector.shape_cast %12 : vector<1x128x128xf32> to vector<128x128xf32>
    %cst_13 = arith.constant dense<0.000000e+00> : vector<16x128xf32>
    %14 = tpu.matmul %11, %13, %cst_13 {dimension_numbers = #tpu.dot_dimension_numbers<[1], [0], [0], [1], [0, 0, 1, 1], [], []>} : vector<16x128xf32>, vector<128x128xf32>, vector<16x128xf32> -> vector<16x128xf32>
    %c1_14 = arith.constant 1 : index
    %c0_15 = arith.constant 0 : index
    %15 = vector.load %arg5[%c1_14, %c0_15] : memref<8x128xf32, #tpu.memory_space<vmem>>, vector<1x128xf32>
    %16 = vector.broadcast %15 : vector<1x128xf32> to vector<16x128xf32>
    %17 = arith.addf %14, %16 : vector<16x128xf32>
    %cst_16 = arith.constant 0.000000e+00 : f32
    %18 = vector.broadcast %cst_16 : f32 to vector<16x128xf32>
    %19 = arith.maximumf %17, %18 : vector<16x128xf32>
    %cst_17 = arith.constant dense<0.000000e+00> : vector<16x128xf32>
    %20 = tpu.matmul %0, %19, %cst_17 {dimension_numbers = #tpu.dot_dimension_numbers<[1], [0], [0], [1], [0, 0, 1, 1], [], []>} : vector<16x16xf32>, vector<16x128xf32>, vector<16x128xf32> -> vector<16x128xf32>
    %c2 = arith.constant 2 : index
    %c0_18 = arith.constant 0 : index
    %c0_19 = arith.constant 0 : index
    %21 = vector.load %arg4[%c2, %c0_18, %c0_19] : memref<8x128x128xf32, #tpu.memory_space<vmem>>, vector<1x128x128xf32>
    %22 = vector.shape_cast %21 : vector<1x128x128xf32> to vector<128x128xf32>
    %cst_20 = arith.constant dense<0.000000e+00> : vector<16x128xf32>
    %23 = tpu.matmul %20, %22, %cst_20 {dimension_numbers = #tpu.dot_dimension_numbers<[1], [0], [0], [1], [0, 0, 1, 1], [], []>} : vector<16x128xf32>, vector<128x128xf32>, vector<16x128xf32> -> vector<16x128xf32>
    %c2_21 = arith.constant 2 : index
    %c0_22 = arith.constant 0 : index
    %24 = vector.load %arg5[%c2_21, %c0_22] : memref<8x128xf32, #tpu.memory_space<vmem>>, vector<1x128xf32>
    %25 = vector.broadcast %24 : vector<1x128xf32> to vector<16x128xf32>
    %26 = arith.addf %23, %25 : vector<16x128xf32>
    %cst_23 = arith.constant 0.000000e+00 : f32
    %27 = vector.broadcast %cst_23 : f32 to vector<16x128xf32>
    %28 = arith.maximumf %26, %27 : vector<16x128xf32>
    %cst_24 = arith.constant dense<0.000000e+00> : vector<16x128xf32>
    %29 = tpu.matmul %0, %28, %cst_24 {dimension_numbers = #tpu.dot_dimension_numbers<[1], [0], [0], [1], [0, 0, 1, 1], [], []>} : vector<16x16xf32>, vector<16x128xf32>, vector<16x128xf32> -> vector<16x128xf32>
    %c3 = arith.constant 3 : index
    %c0_25 = arith.constant 0 : index
    %c0_26 = arith.constant 0 : index
    %30 = vector.load %arg4[%c3, %c0_25, %c0_26] : memref<8x128x128xf32, #tpu.memory_space<vmem>>, vector<1x128x128xf32>
    %31 = vector.shape_cast %30 : vector<1x128x128xf32> to vector<128x128xf32>
    %cst_27 = arith.constant dense<0.000000e+00> : vector<16x128xf32>
    %32 = tpu.matmul %29, %31, %cst_27 {dimension_numbers = #tpu.dot_dimension_numbers<[1], [0], [0], [1], [0, 0, 1, 1], [], []>} : vector<16x128xf32>, vector<128x128xf32>, vector<16x128xf32> -> vector<16x128xf32>
    %c3_28 = arith.constant 3 : index
    %c0_29 = arith.constant 0 : index
    %33 = vector.load %arg5[%c3_28, %c0_29] : memref<8x128xf32, #tpu.memory_space<vmem>>, vector<1x128xf32>
    %34 = vector.broadcast %33 : vector<1x128xf32> to vector<16x128xf32>
    %35 = arith.addf %32, %34 : vector<16x128xf32>
    %cst_30 = arith.constant 0.000000e+00 : f32
    %36 = vector.broadcast %cst_30 : f32 to vector<16x128xf32>
    %37 = arith.maximumf %35, %36 : vector<16x128xf32>
    %cst_31 = arith.constant dense<0.000000e+00> : vector<16x128xf32>
    %38 = tpu.matmul %0, %37, %cst_31 {dimension_numbers = #tpu.dot_dimension_numbers<[1], [0], [0], [1], [0, 0, 1, 1], [], []>} : vector<16x16xf32>, vector<16x128xf32>, vector<16x128xf32> -> vector<16x128xf32>
    %c4 = arith.constant 4 : index
    %c0_32 = arith.constant 0 : index
    %c0_33 = arith.constant 0 : index
    %39 = vector.load %arg4[%c4, %c0_32, %c0_33] : memref<8x128x128xf32, #tpu.memory_space<vmem>>, vector<1x128x128xf32>
    %40 = vector.shape_cast %39 : vector<1x128x128xf32> to vector<128x128xf32>
    %cst_34 = arith.constant dense<0.000000e+00> : vector<16x128xf32>
    %41 = tpu.matmul %38, %40, %cst_34 {dimension_numbers = #tpu.dot_dimension_numbers<[1], [0], [0], [1], [0, 0, 1, 1], [], []>} : vector<16x128xf32>, vector<128x128xf32>, vector<16x128xf32> -> vector<16x128xf32>
    %c4_35 = arith.constant 4 : index
    %c0_36 = arith.constant 0 : index
    %42 = vector.load %arg5[%c4_35, %c0_36] : memref<8x128xf32, #tpu.memory_space<vmem>>, vector<1x128xf32>
    %43 = vector.broadcast %42 : vector<1x128xf32> to vector<16x128xf32>
    %44 = arith.addf %41, %43 : vector<16x128xf32>
    %cst_37 = arith.constant 0.000000e+00 : f32
    %45 = vector.broadcast %cst_37 : f32 to vector<16x128xf32>
    %46 = arith.maximumf %44, %45 : vector<16x128xf32>
    %cst_38 = arith.constant dense<0.000000e+00> : vector<16x128xf32>
    %47 = tpu.matmul %0, %46, %cst_38 {dimension_numbers = #tpu.dot_dimension_numbers<[1], [0], [0], [1], [0, 0, 1, 1], [], []>} : vector<16x16xf32>, vector<16x128xf32>, vector<16x128xf32> -> vector<16x128xf32>
    %c5 = arith.constant 5 : index
    %c0_39 = arith.constant 0 : index
    %c0_40 = arith.constant 0 : index
    %48 = vector.load %arg4[%c5, %c0_39, %c0_40] : memref<8x128x128xf32, #tpu.memory_space<vmem>>, vector<1x128x128xf32>
    %49 = vector.shape_cast %48 : vector<1x128x128xf32> to vector<128x128xf32>
    %cst_41 = arith.constant dense<0.000000e+00> : vector<16x128xf32>
    %50 = tpu.matmul %47, %49, %cst_41 {dimension_numbers = #tpu.dot_dimension_numbers<[1], [0], [0], [1], [0, 0, 1, 1], [], []>} : vector<16x128xf32>, vector<128x128xf32>, vector<16x128xf32> -> vector<16x128xf32>
    %c5_42 = arith.constant 5 : index
    %c0_43 = arith.constant 0 : index
    %51 = vector.load %arg5[%c5_42, %c0_43] : memref<8x128xf32, #tpu.memory_space<vmem>>, vector<1x128xf32>
    %52 = vector.broadcast %51 : vector<1x128xf32> to vector<16x128xf32>
    %53 = arith.addf %50, %52 : vector<16x128xf32>
    %cst_44 = arith.constant 0.000000e+00 : f32
    %54 = vector.broadcast %cst_44 : f32 to vector<16x128xf32>
    %55 = arith.maximumf %53, %54 : vector<16x128xf32>
    %c0_45 = arith.constant 0 : index
    %c0_46 = arith.constant 0 : index
    %56 = vector.load %arg3[%c0_45, %c0_46] : memref<16x8xf32, #tpu.memory_space<vmem>>, vector<16x8xf32>
    %57 = vector.shape_cast %56 : vector<16x8xf32> to vector<16x8x1xf32>
    %58 = vector.shape_cast %55 : vector<16x128xf32> to vector<16x1x128xf32>
    %59 = vector.broadcast %57 : vector<16x8x1xf32> to vector<16x8x128xf32>
    %60 = vector.broadcast %58 : vector<16x1x128xf32> to vector<16x8x128xf32>
    %61 = arith.mulf %59, %60 : vector<16x8x128xf32>
    %cst_47 = arith.constant dense<0xFF800000> : vector<8x128xf32>
    %62 = vector.multi_reduction <maximumf>, %61, %cst_47 [0] : vector<16x8x128xf32> to vector<8x128xf32>
    %c6 = arith.constant 6 : index
    %c0_48 = arith.constant 0 : index
    %c0_49 = arith.constant 0 : index
    %63 = vector.load %arg4[%c6, %c0_48, %c0_49] : memref<8x128x128xf32, #tpu.memory_space<vmem>>, vector<1x128x128xf32>
    %64 = vector.shape_cast %63 : vector<1x128x128xf32> to vector<128x128xf32>
    %cst_50 = arith.constant dense<0.000000e+00> : vector<8x128xf32>
    %65 = tpu.matmul %62, %64, %cst_50 {dimension_numbers = #tpu.dot_dimension_numbers<[1], [0], [0], [1], [0, 0, 1, 1], [], []>} : vector<8x128xf32>, vector<128x128xf32>, vector<8x128xf32> -> vector<8x128xf32>
    %c6_51 = arith.constant 6 : index
    %c0_52 = arith.constant 0 : index
    %66 = vector.load %arg5[%c6_51, %c0_52] : memref<8x128xf32, #tpu.memory_space<vmem>>, vector<1x128xf32>
    %67 = vector.broadcast %66 : vector<1x128xf32> to vector<8x128xf32>
    %68 = arith.addf %65, %67 : vector<8x128xf32>
    %cst_53 = arith.constant 0.000000e+00 : f32
    %69 = vector.broadcast %cst_53 : f32 to vector<8x128xf32>
    %70 = arith.maximumf %68, %69 : vector<8x128xf32>
    %c7 = arith.constant 7 : index
    %c0_54 = arith.constant 0 : index
    %c0_55 = arith.constant 0 : index
    %71 = vector.load %arg4[%c7, %c0_54, %c0_55] : memref<8x128x128xf32, #tpu.memory_space<vmem>>, vector<1x128x128xf32>
    %72 = vector.shape_cast %71 : vector<1x128x128xf32> to vector<128x128xf32>
    %cst_56 = arith.constant dense<0.000000e+00> : vector<8x128xf32>
    %73 = tpu.matmul %70, %72, %cst_56 {dimension_numbers = #tpu.dot_dimension_numbers<[1], [0], [0], [1], [0, 0, 1, 1], [], []>} : vector<8x128xf32>, vector<128x128xf32>, vector<8x128xf32> -> vector<8x128xf32>
    %c7_57 = arith.constant 7 : index
    %c0_58 = arith.constant 0 : index
    %74 = vector.load %arg5[%c7_57, %c0_58] : memref<8x128xf32, #tpu.memory_space<vmem>>, vector<1x128xf32>
    %75 = vector.broadcast %74 : vector<1x128xf32> to vector<8x128xf32>
    %76 = arith.addf %73, %75 : vector<8x128xf32>
    %c0_59 = arith.constant 0 : index
    %c0_60 = arith.constant 0 : index
    %77 = vector.load %arg6[%c0_59, %c0_60] : memref<8x128xf32, #tpu.memory_space<vmem>>, vector<8x128xf32>
    tpu.vector_store %arg6[%c0_59, %c0_60], %76 {strides = array<i32>} : memref<8x128xf32, #tpu.memory_space<vmem>>, vector<8x128xf32>,
    return
  }
  func.func @transform_0(%arg0: i32) -> (i32, i32) {
    %c0_i32 = arith.constant 0 : i32
    %c0_i32_0 = arith.constant 0 : i32
    %c0_i32_1 = arith.constant 0 : i32
    return %c0_i32, %c0_i32_0 : i32, i32
  }
  func.func @transform_1(%arg0: i32) -> (i32, i32) {
    %c0_i32 = arith.constant 0 : i32
    %c0_i32_0 = arith.constant 0 : i32
    %c0_i32_1 = arith.constant 0 : i32
    return %c0_i32, %c0_i32_0 : i32, i32
  }
  func.func @transform_2(%arg0: i32) -> (i32, i32) {
    %c0_i32 = arith.constant 0 : i32
    %c0_i32_0 = arith.constant 0 : i32
    %c0_i32_1 = arith.constant 0 : i32
    return %c0_i32, %c0_i32_0 : i32, i32
  }
  func.func @transform_3(%arg0: i32) -> (i32, i32, i32) {
    %c0_i32 = arith.constant 0 : i32
    %c0_i32_0 = arith.constant 0 : i32
    %c0_i32_1 = arith.constant 0 : i32
    %c0_i32_2 = arith.constant 0 : i32
    return %c0_i32, %c0_i32_0, %c0_i32_1 : i32, i32, i32
  }
  func.func @transform_4(%arg0: i32) -> (i32, i32) {
    %c0_i32 = arith.constant 0 : i32
    %c0_i32_0 = arith.constant 0 : i32
    %c0_i32_1 = arith.constant 0 : i32
    return %c0_i32, %c0_i32_0 : i32, i32
  }
  func.func @transform_5(%arg0: i32) -> (i32, i32) {
    %c0_i32 = arith.constant 0 : i32
    %c0_i32_0 = arith.constant 0 : i32
    %c0_i32_1 = arith.constant 0 : i32
    return %c0_i32, %c0_i32_0 : i32, i32
  }
}

</mosaic_0001>

<llo_original>
// kernel: tpu_custom_call.1
$region0: #{tpu_custom_call.1}
  #allocation0 [shape = 'u32[]', space=smem, size = 0x4, offset = 0x4, fixed_abs, tag = 'smem constant byte address 0x4 - core index']
  #allocation1 [shape = 'u32[144,128]{1,0:T(1,128)}', space=vmem, size = 0x12000, scoped, tag = 'internal scratch']
  %s0 = inlined_call_operand.vmem [shape: f32[16,16], index: 0, kind: input, shape index: {}]
  %s1 = inlined_call_operand.hbm [shape: f32[16,128], index: 1, kind: input, shape index: {}]
  %s2 = inlined_call_operand.vmem [shape: f32[16,8], index: 2, kind: input, shape index: {}]
  %s3 = inlined_call_operand.hbm [shape: f32[8,128,128], index: 3, kind: input, shape index: {}]
  %s4 = inlined_call_operand.vmem [shape: f32[8,128], index: 4, kind: input, shape index: {}]
  %s5 = inlined_call_operand.hbm [shape: f32[8,128], index: 5, kind: output, shape index: {}]
  %s6 = sld [smem:[#allocation0]]
  $region38: #{tpu_custom_call.1} parent=0
    _
  %s8 = ssub.s32 1, %s6
  %s9 = scalar_select 0, %s8, %s6
  $region1: #{tpu_custom_call.1} parent=0
    #allocation2 [shape = 'u8[8192]{0}', space=vmem, size = 0x2000, scoped, tag = 'input window, operand 1, single buffered']
    #allocation3 [shape = 's32[1]{0}', space=sflag, size = 0x4, scoped, tag = 'scoped memory for tpu_custom_call.1']
    #allocation4 [shape = 's32[1]{0}', space=sflag, size = 0x4, scoped, tag = 'scoped memory for tpu_custom_call.1']
    #allocation5 [shape = 'u8[524288]{0}', space=vmem, size = 0x80000, scoped, tag = 'input window, operand 3, single buffered']
    #allocation6 [shape = 's32[1]{0}', space=sflag, size = 0x4, scoped, tag = 'scoped memory for tpu_custom_call.1']
    #allocation7 [shape = 'u8[4096]{0}', space=vmem, size = 0x1000, scoped, tag = 'output window, operand 0, single buffered']
    %10 = vsyncpa [#allocation3], 0
    %11 = vsyncpa [#allocation6], 0
    %12 = vsyncpa [#allocation4], 0
    // Predicated region
    $region2: #{tpu_custom_call.1} parent=1 // pred_check
      _
    $region3: #{tpu_custom_call.1} parent=1 // pred_check_branch
      %14 = sbr.rel (0) target = $region5
    $region4: #{tpu_custom_call.1} parent=1 // pred_region
      _
    $region5: #{tpu_custom_call.1} parent=1 // pred_fallthru
      _
    // Predicated region
    $region6: #{tpu_custom_call.1} parent=1 // pred_check
      _
    $region7: #{tpu_custom_call.1} parent=1 // pred_check_branch
      %16 = sbr.rel (0) target = $region9
    $region8: #{tpu_custom_call.1} parent=1 // pred_region
      %s18 = ssub.s32 256, 256
      %19 = vsyncadd [#allocation3], %s18
      %s20 = sshll.u32 [#allocation2], 4
      %s21 = int_to_ptr.vmem [resolvable:$true] %s20
      %26 = dma.hbm_to_vmem [thread:$0]  %s1, 256, %s21, [#allocation3], 128, 128, 8
    $region9: #{tpu_custom_call.1} parent=1 // pred_fallthru
      _
    // Predicated region
    $region10: #{tpu_custom_call.1} parent=1 // pred_check
      _
    $region11: #{tpu_custom_call.1} parent=1 // pred_check_branch
      %28 = sbr.rel (0) target = $region13
    $region12: #{tpu_custom_call.1} parent=1 // pred_region
      _
    $region13: #{tpu_custom_call.1} parent=1 // pred_fallthru
      _
    // Predicated region
    $region14: #{tpu_custom_call.1} parent=1 // pred_check
      _
    $region15: #{tpu_custom_call.1} parent=1 // pred_check_branch
      %30 = sbr.rel (0) target = $region17
    $region16: #{tpu_custom_call.1} parent=1 // pred_region
      %s32 = ssub.s32 16384, 16384
      %33 = vsyncadd [#allocation6], %s32
      %s34 = sshll.u32 [#allocation5], 4
      %s35 = int_to_ptr.vmem [resolvable:$true] %s34
      %40 = dma.hbm_to_vmem [thread:$0]  %s3, 16384, %s35, [#allocation6], 128, 128, 8
    $region17: #{tpu_custom_call.1} parent=1 // pred_fallthru
      _
    // Predicated region
    $region18: #{tpu_custom_call.1} parent=1 // pred_check
      _
    $region19: #{tpu_custom_call.1} parent=1 // pred_check_branch
      %42 = sbr.rel (0) target = $region21
    $region20: #{tpu_custom_call.1} parent=1 // pred_region
      _
    $region21: #{tpu_custom_call.1} parent=1 // pred_fallthru
      _
    // Predicated region
    $region22: #{tpu_custom_call.1} parent=1 // pred_check
      _
    $region23: #{tpu_custom_call.1} parent=1 // pred_check_branch
      %44 = sbr.rel (0) target = $region25
    $region24: #{tpu_custom_call.1} parent=1 // pred_region
      %45 = dma.done [#allocation3], 256
    $region25: #{tpu_custom_call.1} parent=1 // pred_fallthru
      _
    // Predicated region
    $region26: #{tpu_custom_call.1} parent=1 // pred_check
      _
    $region27: #{tpu_custom_call.1} parent=1 // pred_check_branch
      %47 = sbr.rel (0) target = $region29
    $region28: #{tpu_custom_call.1} parent=1 // pred_region
      %48 = dma.done [#allocation6], 16384
    $region29: #{tpu_custom_call.1} parent=1 // pred_fallthru
      _
    %v49 = vld [vmem:[%s0] sm:$0xff]
    %v50 = vld [vmem:[%s0 + $0x8] sm:$0xff]
    %v51 = vld [vmem:[#allocation2] sm:$0xff]
    %v52 = vld [vmem:[#allocation2 + $0x8] sm:$0xff]
    %vm53 = vcmask 130048
    %v55 = vsel %vm53, %v49, 0
    %v58 = vsel %vm53, %v50, 0
    %60 = vmatprep.subr.mxu0 0.0
    %61 = vmatpush1.msra.mxu0 %v51
    %62 = vmatprep.subr.mxu0 0.0
    %63 = vmatpush1.msra.mxu0 %v52
    %64 = vmatprep.subr.mxu0 0.0
    %65 = vmatpush1.msra.mxu0 0.0
    %66 = vmatprep.subr.mxu0 0.0
    %67 = vmatpush1.msra.mxu0 0.0
    %68 = vmatprep.subr.mxu0 0.0
    %69 = vmatpush1.msra.mxu0 0.0
    %70 = vmatprep.subr.mxu0 0.0
    %71 = vmatpush1.msra.mxu0 0.0
    %72 = vmatprep.subr.mxu0 0.0
    %73 = vmatpush1.msra.mxu0 0.0
    %74 = vmatprep.subr.mxu0 0.0
    %75 = vmatpush1.msra.mxu0 0.0
    %76 = vmatprep.subr.mxu0 0.0
    %77 = vmatpush1.msra.mxu0 0.0
    %78 = vmatprep.subr.mxu0 0.0
    %79 = vmatpush1.msra.mxu0 0.0
    %80 = vmatprep.subr.mxu0 0.0
    %81 = vmatpush1.msra.mxu0 0.0
    %82 = vmatprep.subr.mxu0 0.0
    %83 = vmatpush1.msra.mxu0 0.0
    %84 = vmatprep.subr.mxu0 0.0
    %85 = vmatpush1.msra.mxu0 0.0
    %86 = vmatprep.subr.mxu0 0.0
    %87 = vmatpush1.msra.mxu0 0.0
    %88 = vmatprep.subr.mxu0 0.0
    %89 = vmatpush1.msra.mxu0 0.0
    %90 = vmatprep.subr.mxu0 0.0
    %91 = vmatpush1.msra.mxu0 0.0
    %92 = vmatprep.subr.mxu0 0.0
    %93 = vmatpush1.msra.mxu0 0.0
    %94 = vmatprep.subr.mxu0 0.0
    %95 = vmatpush1.msra.mxu0 0.0
    %96 = vmatprep.subr.mxu0 0.0
    %97 = vmatpush1.msra.mxu0 0.0
    %98 = vmatprep.subr.mxu0 0.0
    %99 = vmatpush1.msra.mxu0 0.0
    %100 = vmatprep.subr.mxu0 0.0
    %101 = vmatpush1.msra.mxu0 0.0
    %102 = vmatprep.subr.mxu0 0.0
    %103 = vmatpush1.msra.mxu0 0.0
    %104 = vmatprep.subr.mxu0 0.0
    %105 = vmatpush1.msra.mxu0 0.0
    %106 = vmatprep.subr.mxu0 0.0
    %107 = vmatpush1.msra.mxu0 0.0
    %108 = vmatprep.subr.mxu0 0.0
    %109 = vmatpush1.msra.mxu0 0.0
    %110 = vmatprep.subr.mxu0 0.0
    %111 = vmatpush1.msra.mxu0 0.0
    %112 = vmatprep.subr.mxu0 0.0
    %113 = vmatpush1.msra.mxu0 0.0
    %114 = vmatprep.subr.mxu0 0.0
    %115 = vmatpush1.msra.mxu0 0.0
    %116 = vmatprep.subr.mxu0 0.0
    %117 = vmatpush1.msra.mxu0 0.0
    %118 = vmatprep.subr.mxu0 0.0
    %119 = vmatpush1.msra.mxu0 0.0
    %120 = vmatprep.subr.mxu0 0.0
    %121 = vmatpush1.msra.mxu0 0.0
    %122 = vmatprep.subr.mxu0 0.0
    %123 = vmatpush1.msra.mxu0 0.0
    %124 = vmatprep.mubr.f32.mxu0 0.0
    %125 = vmatmul.mubr.f32.gmra.mrb[0].mxu0 %v55
    %v126 = vpop.f32.mrb[0].mxu0
    %v127 = vadd.f32 0.0, %v126
    %v128 = vpop.f32.mrb[0].mxu0
    %129 = vmatprep.mubr.f32.mxu0 0.0
    %130 = vmatmul.mubr.f32.gmra.mrb[0].mxu0 %v58
    %v131 = vpop.f32.mrb[0].mxu0
    %v132 = vadd.f32 0.0, %v131
    %v133 = vpop.f32.mrb[0].mxu0
    %134 = vdwg.mxu0
    %v135 = vld [vmem:[#allocation5] sm:$0xff]
    %v136 = vld [vmem:[#allocation5 + $0x8] sm:$0xff]
    %v137 = vld [vmem:[#allocation5 + $0x10] sm:$0xff]
    %v138 = vld [vmem:[#allocation5 + $0x18] sm:$0xff]
    %v139 = vld [vmem:[#allocation5 + $0x20] sm:$0xff]
    %v140 = vld [vmem:[#allocation5 + $0x28] sm:$0xff]
    %v141 = vld [vmem:[#allocation5 + $0x30] sm:$0xff]
    %v142 = vld [vmem:[#allocation5 + $0x38] sm:$0xff]
    %v143 = vld [vmem:[#allocation5 + $0x40] sm:$0xff]
    %v144 = vld [vmem:[#allocation5 + $0x48] sm:$0xff]
    %v145 = vld [vmem:[#allocation5 + $0x50] sm:$0xff]
    %v146 = vld [vmem:[#allocation5 + $0x58] sm:$0xff]
    %v147 = vld [vmem:[#allocation5 + $0x60] sm:$0xff]
    %v148 = vld [vmem:[#allocation5 + $0x68] sm:$0xff]
    %v149 = vld [vmem:[#allocation5 + $0x70] sm:$0xff]
    %v150 = vld [vmem:[#allocation5 + $0x78] sm:$0xff]
    %v151 = vld [vmem:[%s4] sm:$0x1]
    %v152 = vlaneseq
    %v153 = vshrl.u32 %v152, 7
    %v154 = vsub.s32 0, %v153
    %v155 = vrot.slane %v151, %v154
    %156 = vmatprep.subr.mxu0 0.0
    %157 = vmatpush1.msra.mxu0 %v135
    %158 = vmatprep.subr.mxu0 0.0
    %159 = vmatpush1.msra.mxu0 %v136
    %160 = vmatprep.subr.mxu0 0.0
    %161 = vmatpush1.msra.mxu0 %v137
    %162 = vmatprep.subr.mxu0 0.0
    %163 = vmatpush1.msra.mxu0 %v138
    %164 = vmatprep.subr.mxu0 0.0
    %165 = vmatpush1.msra.mxu0 %v139
    %166 = vmatprep.subr.mxu0 0.0
    %167 = vmatpush1.msra.mxu0 %v140
    %168 = vmatprep.subr.mxu0 0.0
    %169 = vmatpush1.msra.mxu0 %v141
    %170 = vmatprep.subr.mxu0 0.0
    %171 = vmatpush1.msra.mxu0 %v142
    %172 = vmatprep.subr.mxu0 0.0
    %173 = vmatpush1.msra.mxu0 %v143
    %174 = vmatprep.subr.mxu0 0.0
    %175 = vmatpush1.msra.mxu0 %v144
    %176 = vmatprep.subr.mxu0 0.0
    %177 = vmatpush1.msra.mxu0 %v145
    %178 = vmatprep.subr.mxu0 0.0
    %179 = vmatpush1.msra.mxu0 %v146
    %180 = vmatprep.subr.mxu0 0.0
    %181 = vmatpush1.msra.mxu0 %v147
    %182 = vmatprep.subr.mxu0 0.0
    %183 = vmatpush1.msra.mxu0 %v148
    %184 = vmatprep.subr.mxu0 0.0
    %185 = vmatpush1.msra.mxu0 %v149
    %186 = vmatprep.subr.mxu0 0.0
    %187 = vmatpush1.msra.mxu0 %v150
    %188 = vmatprep.subr.mxu0 0.0
    %189 = vmatpush1.msra.mxu0 0.0
    %190 = vmatprep.subr.mxu0 0.0
    %191 = vmatpush1.msra.mxu0 0.0
    %192 = vmatprep.subr.mxu0 0.0
    %193 = vmatpush1.msra.mxu0 0.0
    %194 = vmatprep.subr.mxu0 0.0
    %195 = vmatpush1.msra.mxu0 0.0
    %196 = vmatprep.subr.mxu0 0.0
    %197 = vmatpush1.msra.mxu0 0.0
    %198 = vmatprep.subr.mxu0 0.0
    %199 = vmatpush1.msra.mxu0 0.0
    %200 = vmatprep.subr.mxu0 0.0
    %201 = vmatpush1.msra.mxu0 0.0
    %202 = vmatprep.subr.mxu0 0.0
    %203 = vmatpush1.msra.mxu0 0.0
    %204 = vmatprep.subr.mxu0 0.0
    %205 = vmatpush1.msra.mxu0 0.0
    %206 = vmatprep.subr.mxu0 0.0
    %207 = vmatpush1.msra.mxu0 0.0
    %208 = vmatprep.subr.mxu0 0.0
    %209 = vmatpush1.msra.mxu0 0.0
    %210 = vmatprep.subr.mxu0 0.0
    %211 = vmatpush1.msra.mxu0 0.0
    %212 = vmatprep.subr.mxu0 0.0
    %213 = vmatpush1.msra.mxu0 0.0
    %214 = vmatprep.subr.mxu0 0.0
    %215 = vmatpush1.msra.mxu0 0.0
    %216 = vmatprep.subr.mxu0 0.0
    %217 = vmatpush1.msra.mxu0 0.0
    %218 = vmatprep.subr.mxu0 0.0
    %219 = vmatpush1.msra.mxu0 0.0
    %220 = vmatprep.mubr.f32.mxu0 0.0
    %221 = vmatmul.mubr.f32.gmra.mrb[0].mxu0 %v127
    %v222 = vpop.f32.mrb[0].mxu0
    %v223 = vadd.f32 %v155, %v222
    %v224 = vpop.f32.mrb[0].mxu0
    %225 = vmatprep.mubr.f32.mxu0 0.0
    %226 = vmatmul.mubr.f32.gmra.mrb[0].mxu0 %v132
    %v227 = vpop.f32.mrb[0].mxu0
    %v228 = vadd.f32 %v155, %v227
    %v229 = vpop.f32.mrb[0].mxu0
    %230 = vdwg.mxu0
    %v231 = vmax.f32 %v223, 0.0
    %v232 = vmax.f32 %v228, 0.0
    %233 = vmatprep.subr.mxu0 0.0
    %234 = vmatpush1.msra.mxu0 %v231
    %235 = vmatprep.subr.mxu0 0.0
    %236 = vmatpush1.msra.mxu0 %v232
    %237 = vmatprep.subr.mxu0 0.0
    %238 = vmatpush1.msra.mxu0 0.0
    %239 = vmatprep.subr.mxu0 0.0
    %240 = vmatpush1.msra.mxu0 0.0
    %241 = vmatprep.subr.mxu0 0.0
    %242 = vmatpush1.msra.mxu0 0.0
    %243 = vmatprep.subr.mxu0 0.0
    %244 = vmatpush1.msra.mxu0 0.0
    %245 = vmatprep.subr.mxu0 0.0
    %246 = vmatpush1.msra.mxu0 0.0
    %247 = vmatprep.subr.mxu0 0.0
    %248 = vmatpush1.msra.mxu0 0.0
    %249 = vmatprep.subr.mxu0 0.0
    %250 = vmatpush1.msra.mxu0 0.0
    %251 = vmatprep.subr.mxu0 0.0
    %252 = vmatpush1.msra.mxu0 0.0
    %253 = vmatprep.subr.mxu0 0.0
    %254 = vmatpush1.msra.mxu0 0.0
    %255 = vmatprep.subr.mxu0 0.0
    %256 = vmatpush1.msra.mxu0 0.0
    %257 = vmatprep.subr.mxu0 0.0
    %258 = vmatpush1.msra.mxu0 0.0
    %259 = vmatprep.subr.mxu0 0.0
    %260 = vmatpush1.msra.mxu0 0.0
    %261 = vmatprep.subr.mxu0 0.0
    %262 = vmatpush1.msra.mxu0 0.0
    %263 = vmatprep.subr.mxu0 0.0
    %264 = vmatpush1.msra.mxu0 0.0
    %265 = vmatprep.subr.mxu0 0.0
    %266 = vmatpush1.msra.mxu0 0.0
    %267 = vmatprep.subr.mxu0 0.0
    %268 = vmatpush1.msra.mxu0 0.0
    %269 = vmatprep.subr.mxu0 0.0
    %270 = vmatpush1.msra.mxu0 0.0
    %271 = vmatprep.subr.mxu0 0.0
    %272 = vmatpush1.msra.mxu0 0.0
    %273 = vmatprep.subr.mxu0 0.0
    %274 = vmatpush1.msra.mxu0 0.0
    %275 = vmatprep.subr.mxu0 0.0
    %276 = vmatpush1.msra.mxu0 0.0
    %277 = vmatprep.subr.mxu0 0.0
    %278 = vmatpush1.msra.mxu0 0.0
    %279 = vmatprep.subr.mxu0 0.0
    %280 = vmatpush1.msra.mxu0 0.0
    %281 = vmatprep.subr.mxu0 0.0
    %282 = vmatpush1.msra.mxu0 0.0
    %283 = vmatprep.subr.mxu0 0.0
    %284 = vmatpush1.msra.mxu0 0.0
    %285 = vmatprep.subr.mxu0 0.0
    %286 = vmatpush1.msra.mxu0 0.0
    %287 = vmatprep.subr.mxu0 0.0
    %288 = vmatpush1.msra.mxu0 0.0
    %289 = vmatprep.subr.mxu0 0.0
    %290 = vmatpush1.msra.mxu0 0.0
    %291 = vmatprep.subr.mxu0 0.0
    %292 = vmatpush1.msra.mxu0 0.0
    %293 = vmatprep.subr.mxu0 0.0
    %294 = vmatpush1.msra.mxu0 0.0
    %295 = vmatprep.subr.mxu0 0.0
    %296 = vmatpush1.msra.mxu0 0.0
    %297 = vmatprep.mubr.f32.mxu0 0.0
    %298 = vmatmul.mubr.f32.gmra.mrb[0].mxu0 %v55
    %v299 = vpop.f32.mrb[0].mxu0
    %v300 = vadd.f32 0.0, %v299
    %v301 = vpop.f32.mrb[0].mxu0
    %302 = vmatprep.mubr.f32.mxu0 0.0
    %303 = vmatmul.mubr.f32.gmra.mrb[0].mxu0 %v58
    %v304 = vpop.f32.mrb[0].mxu0
    %v305 = vadd.f32 0.0, %v304
    %v306 = vpop.f32.mrb[0].mxu0
    %307 = vdwg.mxu0
    %s308 = scalar_lea.vmem [#allocation5], 128
    %v309 = vld [vmem:[%s308] sm:$0xff]
    %v310 = vld [vmem:[%s308 + $0x8] sm:$0xff]
    %v311 = vld [vmem:[%s308 + $0x10] sm:$0xff]
    %v312 = vld [vmem:[%s308 + $0x18] sm:$0xff]
    %v313 = vld [vmem:[%s308 + $0x20] sm:$0xff]
    %v314 = vld [vmem:[%s308 + $0x28] sm:$0xff]
    %v315 = vld [vmem:[%s308 + $0x30] sm:$0xff]
    %v316 = vld [vmem:[%s308 + $0x38] sm:$0xff]
    %v317 = vld [vmem:[%s308 + $0x40] sm:$0xff]
    %v318 = vld [vmem:[%s308 + $0x48] sm:$0xff]
    %v319 = vld [vmem:[%s308 + $0x50] sm:$0xff]
    %v320 = vld [vmem:[%s308 + $0x58] sm:$0xff]
    %v321 = vld [vmem:[%s308 + $0x60] sm:$0xff]
    %v322 = vld [vmem:[%s308 + $0x68] sm:$0xff]
    %v323 = vld [vmem:[%s308 + $0x70] sm:$0xff]
    %v324 = vld [vmem:[%s308 + $0x78] sm:$0xff]
    %v325 = vld [vmem:[%s4 + $0x1] sm:$0x1]
    %v326 = vlaneseq
    %v327 = vshrl.u32 %v326, 7
    %v328 = vsub.s32 0, %v327
    %v329 = vrot.slane %v325, %v328
    %330 = vmatprep.subr.mxu0 0.0
    %331 = vmatpush1.msra.mxu0 %v309
    %332 = vmatprep.subr.mxu0 0.0
    %333 = vmatpush1.msra.mxu0 %v310
    %334 = vmatprep.subr.mxu0 0.0
    %335 = vmatpush1.msra.mxu0 %v311
    %336 = vmatprep.subr.mxu0 0.0
    %337 = vmatpush1.msra.mxu0 %v312
    %338 = vmatprep.subr.mxu0 0.0
    %339 = vmatpush1.msra.mxu0 %v313
    %340 = vmatprep.subr.mxu0 0.0
    %341 = vmatpush1.msra.mxu0 %v314
    %342 = vmatprep.subr.mxu0 0.0
    %343 = vmatpush1.msra.mxu0 %v315
    %344 = vmatprep.subr.mxu0 0.0
    %345 = vmatpush1.msra.mxu0 %v316
    %346 = vmatprep.subr.mxu0 0.0
    %347 = vmatpush1.msra.mxu0 %v317
    %348 = vmatprep.subr.mxu0 0.0
    %349 = vmatpush1.msra.mxu0 %v318
    %350 = vmatprep.subr.mxu0 0.0
    %351 = vmatpush1.msra.mxu0 %v319
    %352 = vmatprep.subr.mxu0 0.0
    %353 = vmatpush1.msra.mxu0 %v320
    %354 = vmatprep.subr.mxu0 0.0
    %355 = vmatpush1.msra.mxu0 %v321
    %356 = vmatprep.subr.mxu0 0.0
    %357 = vmatpush1.msra.mxu0 %v322
    %358 = vmatprep.subr.mxu0 0.0
    %359 = vmatpush1.msra.mxu0 %v323
    %360 = vmatprep.subr.mxu0 0.0
    %361 = vmatpush1.msra.mxu0 %v324
    %362 = vmatprep.subr.mxu0 0.0
    %363 = vmatpush1.msra.mxu0 0.0
    %364 = vmatprep.subr.mxu0 0.0
    %365 = vmatpush1.msra.mxu0 0.0
    %366 = vmatprep.subr.mxu0 0.0
    %367 = vmatpush1.msra.mxu0 0.0
    %368 = vmatprep.subr.mxu0 0.0
    %369 = vmatpush1.msra.mxu0 0.0
    %370 = vmatprep.subr.mxu0 0.0
    %371 = vmatpush1.msra.mxu0 0.0
    %372 = vmatprep.subr.mxu0 0.0
    %373 = vmatpush1.msra.mxu0 0.0
    %374 = vmatprep.subr.mxu0 0.0
    %375 = vmatpush1.msra.mxu0 0.0
    %376 = vmatprep.subr.mxu0 0.0
    %377 = vmatpush1.msra.mxu0 0.0
    %378 = vmatprep.subr.mxu0 0.0
    %379 = vmatpush1.msra.mxu0 0.0
    %380 = vmatprep.subr.mxu0 0.0
    %381 = vmatpush1.msra.mxu0 0.0
    %382 = vmatprep.subr.mxu0 0.0
    %383 = vmatpush1.msra.mxu0 0.0
    %384 = vmatprep.subr.mxu0 0.0
    %385 = vmatpush1.msra.mxu0 0.0
    %386 = vmatprep.subr.mxu0 0.0
    %387 = vmatpush1.msra.mxu0 0.0
    %388 = vmatprep.subr.mxu0 0.0
    %389 = vmatpush1.msra.mxu0 0.0
    %390 = vmatprep.subr.mxu0 0.0
    %391 = vmatpush1.msra.mxu0 0.0
    %392 = vmatprep.subr.mxu0 0.0
    %393 = vmatpush1.msra.mxu0 0.0
    %394 = vmatprep.mubr.f32.mxu0 0.0
    %395 = vmatmul.mubr.f32.gmra.mrb[0].mxu0 %v300
    %v396 = vpop.f32.mrb[0].mxu0
    %v397 = vadd.f32 %v329, %v396
    %v398 = vpop.f32.mrb[0].mxu0
    %399 = vmatprep.mubr.f32.mxu0 0.0
    %400 = vmatmul.mubr.f32.gmra.mrb[0].mxu0 %v305
    %v401 = vpop.f32.mrb[0].mxu0
    %v402 = vadd.f32 %v329, %v401
    %v403 = vpop.f32.mrb[0].mxu0
    %404 = vdwg.mxu0
    %v405 = vmax.f32 %v397, 0.0
    %v406 = vmax.f32 %v402, 0.0
    %407 = vmatprep.subr.mxu0 0.0
    %408 = vmatpush1.msra.mxu0 %v405
    %409 = vmatprep.subr.mxu0 0.0
    %410 = vmatpush1.msra.mxu0 %v406
    %411 = vmatprep.subr.mxu0 0.0
    %412 = vmatpush1.msra.mxu0 0.0
    %413 = vmatprep.subr.mxu0 0.0
    %414 = vmatpush1.msra.mxu0 0.0
    %415 = vmatprep.subr.mxu0 0.0
    %416 = vmatpush1.msra.mxu0 0.0
    %417 = vmatprep.subr.mxu0 0.0
    %418 = vmatpush1.msra.mxu0 0.0
    %419 = vmatprep.subr.mxu0 0.0
    %420 = vmatpush1.msra.mxu0 0.0
    %421 = vmatprep.subr.mxu0 0.0
    %422 = vmatpush1.msra.mxu0 0.0
    %423 = vmatprep.subr.mxu0 0.0
    %424 = vmatpush1.msra.mxu0 0.0
    %425 = vmatprep.subr.mxu0 0.0
    %426 = vmatpush1.msra.mxu0 0.0
    %427 = vmatprep.subr.mxu0 0.0
    %428 = vmatpush1.msra.mxu0 0.0
    %429 = vmatprep.subr.mxu0 0.0
    %430 = vmatpush1.msra.mxu0 0.0
    %431 = vmatprep.subr.mxu0 0.0
    %432 = vmatpush1.msra.mxu0 0.0
    %433 = vmatprep.subr.mxu0 0.0
    %434 = vmatpush1.msra.mxu0 0.0
    %435 = vmatprep.subr.mxu0 0.0
    %436 = vmatpush1.msra.mxu0 0.0
    %437 = vmatprep.subr.mxu0 0.0
    %438 = vmatpush1.msra.mxu0 0.0
    %439 = vmatprep.subr.mxu0 0.0
    %440 = vmatpush1.msra.mxu0 0.0
    %441 = vmatprep.subr.mxu0 0.0
    %442 = vmatpush1.msra.mxu0 0.0
    %443 = vmatprep.subr.mxu0 0.0
    %444 = vmatpush1.msra.mxu0 0.0
    %445 = vmatprep.subr.mxu0 0.0
    %446 = vmatpush1.msra.mxu0 0.0
    %447 = vmatprep.subr.mxu0 0.0
    %448 = vmatpush1.msra.mxu0 0.0
    %449 = vmatprep.subr.mxu0 0.0
    %450 = vmatpush1.msra.mxu0 0.0
    %451 = vmatprep.subr.mxu0 0.0
    %452 = vmatpush1.msra.mxu0 0.0
    %453 = vmatprep.subr.mxu0 0.0
    %454 = vmatpush1.msra.mxu0 0.0
    %455 = vmatprep.subr.mxu0 0.0
    %456 = vmatpush1.msra.mxu0 0.0
    %457 = vmatprep.subr.mxu0 0.0
    %458 = vmatpush1.msra.mxu0 0.0
    %459 = vmatprep.subr.mxu0 0.0
    %460 = vmatpush1.msra.mxu0 0.0
    %461 = vmatprep.subr.mxu0 0.0
    %462 = vmatpush1.msra.mxu0 0.0
    %463 = vmatprep.subr.mxu0 0.0
    %464 = vmatpush1.msra.mxu0 0.0
    %465 = vmatprep.subr.mxu0 0.0
    %466 = vmatpush1.msra.mxu0 0.0
    %467 = vmatprep.subr.mxu0 0.0
    %468 = vmatpush1.msra.mxu0 0.0
    %469 = vmatprep.subr.mxu0 0.0
    %470 = vmatpush1.msra.mxu0 0.0
    %471 = vmatprep.mubr.f32.mxu0 0.0
    %472 = vmatmul.mubr.f32.gmra.mrb[0].mxu0 %v55
    %v473 = vpop.f32.mrb[0].mxu0
    %v474 = vadd.f32 0.0, %v473
    %v475 = vpop.f32.mrb[0].mxu0
    %476 = vmatprep.mubr.f32.mxu0 0.0
    %477 = vmatmul.mubr.f32.gmra.mrb[0].mxu0 %v58
    %v478 = vpop.f32.mrb[0].mxu0
    %v479 = vadd.f32 0.0, %v478
    %v480 = vpop.f32.mrb[0].mxu0
    %481 = vdwg.mxu0
    %s482 = scalar_lea.vmem [#allocation5], 256
    %v483 = vld [vmem:[%s482] sm:$0xff]
    %v484 = vld [vmem:[%s482 + $0x8] sm:$0xff]
    %v485 = vld [vmem:[%s482 + $0x10] sm:$0xff]
    %v486 = vld [vmem:[%s482 + $0x18] sm:$0xff]
    %v487 = vld [vmem:[%s482 + $0x20] sm:$0xff]
    %v488 = vld [vmem:[%s482 + $0x28] sm:$0xff]
    %v489 = vld [vmem:[%s482 + $0x30] sm:$0xff]
    %v490 = vld [vmem:[%s482 + $0x38] sm:$0xff]
    %v491 = vld [vmem:[%s482 + $0x40] sm:$0xff]
    %v492 = vld [vmem:[%s482 + $0x48] sm:$0xff]
    %v493 = vld [vmem:[%s482 + $0x50] sm:$0xff]
    %v494 = vld [vmem:[%s482 + $0x58] sm:$0xff]
    %v495 = vld [vmem:[%s482 + $0x60] sm:$0xff]
    %v496 = vld [vmem:[%s482 + $0x68] sm:$0xff]
    %v497 = vld [vmem:[%s482 + $0x70] sm:$0xff]
    %v498 = vld [vmem:[%s482 + $0x78] sm:$0xff]
    %v499 = vld [vmem:[%s4 + $0x2] sm:$0x1]
    %v500 = vlaneseq
    %v501 = vshrl.u32 %v500, 7
    %v502 = vsub.s32 0, %v501
    %v503 = vrot.slane %v499, %v502
    %504 = vmatprep.subr.mxu0 0.0
    %505 = vmatpush1.msra.mxu0 %v483
    %506 = vmatprep.subr.mxu0 0.0
    %507 = vmatpush1.msra.mxu0 %v484
    %508 = vmatprep.subr.mxu0 0.0
    %509 = vmatpush1.msra.mxu0 %v485
    %510 = vmatprep.subr.mxu0 0.0
    %511 = vmatpush1.msra.mxu0 %v486
    %512 = vmatprep.subr.mxu0 0.0
    %513 = vmatpush1.msra.mxu0 %v487
    %514 = vmatprep.subr.mxu0 0.0
    %515 = vmatpush1.msra.mxu0 %v488
    %516 = vmatprep.subr.mxu0 0.0
    %517 = vmatpush1.msra.mxu0 %v489
    %518 = vmatprep.subr.mxu0 0.0
    %519 = vmatpush1.msra.mxu0 %v490
    %520 = vmatprep.subr.mxu0 0.0
    %521 = vmatpush1.msra.mxu0 %v491
    %522 = vmatprep.subr.mxu0 0.0
    %523 = vmatpush1.msra.mxu0 %v492
    %524 = vmatprep.subr.mxu0 0.0
    %525 = vmatpush1.msra.mxu0 %v493
    %526 = vmatprep.subr.mxu0 0.0
    %527 = vmatpush1.msra.mxu0 %v494
    %528 = vmatprep.subr.mxu0 0.0
    %529 = vmatpush1.msra.mxu0 %v495
    %530 = vmatprep.subr.mxu0 0.0
    %531 = vmatpush1.msra.mxu0 %v496
    %532 = vmatprep.subr.mxu0 0.0
    %533 = vmatpush1.msra.mxu0 %v497
    %534 = vmatprep.subr.mxu0 0.0
    %535 = vmatpush1.msra.mxu0 %v498
    %536 = vmatprep.subr.mxu0 0.0
    %537 = vmatpush1.msra.mxu0 0.0
    %538 = vmatprep.subr.mxu0 0.0
    %539 = vmatpush1.msra.mxu0 0.0
    %540 = vmatprep.subr.mxu0 0.0
    %541 = vmatpush1.msra.mxu0 0.0
    %542 = vmatprep.subr.mxu0 0.0
    %543 = vmatpush1.msra.mxu0 0.0
    %544 = vmatprep.subr.mxu0 0.0
    %545 = vmatpush1.msra.mxu0 0.0
    %546 = vmatprep.subr.mxu0 0.0
    %547 = vmatpush1.msra.mxu0 0.0
    %548 = vmatprep.subr.mxu0 0.0
    %549 = vmatpush1.msra.mxu0 0.0
    %550 = vmatprep.subr.mxu0 0.0
    %551 = vmatpush1.msra.mxu0 0.0
    %552 = vmatprep.subr.mxu0 0.0
    %553 = vmatpush1.msra.mxu0 0.0
    %554 = vmatprep.subr.mxu0 0.0
    %555 = vmatpush1.msra.mxu0 0.0
    %556 = vmatprep.subr.mxu0 0.0
    %557 = vmatpush1.msra.mxu0 0.0
    %558 = vmatprep.subr.mxu0 0.0
    %559 = vmatpush1.msra.mxu0 0.0
    %560 = vmatprep.subr.mxu0 0.0
    %561 = vmatpush1.msra.mxu0 0.0
    %562 = vmatprep.subr.mxu0 0.0
    %563 = vmatpush1.msra.mxu0 0.0
    %564 = vmatprep.subr.mxu0 0.0
    %565 = vmatpush1.msra.mxu0 0.0
    %566 = vmatprep.subr.mxu0 0.0
    %567 = vmatpush1.msra.mxu0 0.0
    %568 = vmatprep.mubr.f32.mxu0 0.0
    %569 = vmatmul.mubr.f32.gmra.mrb[0].mxu0 %v474
    %v570 = vpop.f32.mrb[0].mxu0
    %v571 = vadd.f32 %v503, %v570
    %v572 = vpop.f32.mrb[0].mxu0
    %573 = vmatprep.mubr.f32.mxu0 0.0
    %574 = vmatmul.mubr.f32.gmra.mrb[0].mxu0 %v479
    %v575 = vpop.f32.mrb[0].mxu0
    %v576 = vadd.f32 %v503, %v575
    %v577 = vpop.f32.mrb[0].mxu0
    %578 = vdwg.mxu0
    %v579 = vmax.f32 %v571, 0.0
    %v580 = vmax.f32 %v576, 0.0
    %581 = vmatprep.subr.mxu0 0.0
    %582 = vmatpush1.msra.mxu0 %v579
    %583 = vmatprep.subr.mxu0 0.0
    %584 = vmatpush1.msra.mxu0 %v580
    %585 = vmatprep.subr.mxu0 0.0
    %586 = vmatpush1.msra.mxu0 0.0
    %587 = vmatprep.subr.mxu0 0.0
    %588 = vmatpush1.msra.mxu0 0.0
    %589 = vmatprep.subr.mxu0 0.0
    %590 = vmatpush1.msra.mxu0 0.0
    %591 = vmatprep.subr.mxu0 0.0
    %592 = vmatpush1.msra.mxu0 0.0
    %593 = vmatprep.subr.mxu0 0.0
    %594 = vmatpush1.msra.mxu0 0.0
    %595 = vmatprep.subr.mxu0 0.0
    %596 = vmatpush1.msra.mxu0 0.0
    %597 = vmatprep.subr.mxu0 0.0
    %598 = vmatpush1.msra.mxu0 0.0
    %599 = vmatprep.subr.mxu0 0.0
    %600 = vmatpush1.msra.mxu0 0.0
    %601 = vmatprep.subr.mxu0 0.0
    %602 = vmatpush1.msra.mxu0 0.0
    %603 = vmatprep.subr.mxu0 0.0
    %604 = vmatpush1.msra.mxu0 0.0
    %605 = vmatprep.subr.mxu0 0.0
    %606 = vmatpush1.msra.mxu0 0.0
    %607 = vmatprep.subr.mxu0 0.0
    %608 = vmatpush1.msra.mxu0 0.0
    %609 = vmatprep.subr.mxu0 0.0
    %610 = vmatpush1.msra.mxu0 0.0
    %611 = vmatprep.subr.mxu0 0.0
    %612 = vmatpush1.msra.mxu0 0.0
    %613 = vmatprep.subr.mxu0 0.0
    %614 = vmatpush1.msra.mxu0 0.0
    %615 = vmatprep.subr.mxu0 0.0
    %616 = vmatpush1.msra.mxu0 0.0
    %617 = vmatprep.subr.mxu0 0.0
    %618 = vmatpush1.msra.mxu0 0.0
    %619 = vmatprep.subr.mxu0 0.0
    %620 = vmatpush1.msra.mxu0 0.0
    %621 = vmatprep.subr.mxu0 0.0
    %622 = vmatpush1.msra.mxu0 0.0
    %623 = vmatprep.subr.mxu0 0.0
    %624 = vmatpush1.msra.mxu0 0.0
    %625 = vmatprep.subr.mxu0 0.0
    %626 = vmatpush1.msra.mxu0 0.0
    %627 = vmatprep.subr.mxu0 0.0
    %628 = vmatpush1.msra.mxu0 0.0
    %629 = vmatprep.subr.mxu0 0.0
    %630 = vmatpush1.msra.mxu0 0.0
    %631 = vmatprep.subr.mxu0 0.0
    %632 = vmatpush1.msra.mxu0 0.0
    %633 = vmatprep.subr.mxu0 0.0
    %634 = vmatpush1.msra.mxu0 0.0
    %635 = vmatprep.subr.mxu0 0.0
    %636 = vmatpush1.msra.mxu0 0.0
    %637 = vmatprep.subr.mxu0 0.0
    %638 = vmatpush1.msra.mxu0 0.0
    %639 = vmatprep.subr.mxu0 0.0
    %640 = vmatpush1.msra.mxu0 0.0
    %641 = vmatprep.subr.mxu0 0.0
    %642 = vmatpush1.msra.mxu0 0.0
    %643 = vmatprep.subr.mxu0 0.0
    %644 = vmatpush1.msra.mxu0 0.0
    %645 = vmatprep.mubr.f32.mxu0 0.0
    %646 = vmatmul.mubr.f32.gmra.mrb[0].mxu0 %v55
    %v647 = vpop.f32.mrb[0].mxu0
    %v648 = vadd.f32 0.0, %v647
    %v649 = vpop.f32.mrb[0].mxu0
    %650 = vmatprep.mubr.f32.mxu0 0.0
    %651 = vmatmul.mubr.f32.gmra.mrb[0].mxu0 %v58
    %v652 = vpop.f32.mrb[0].mxu0
    %v653 = vadd.f32 0.0, %v652
    %v654 = vpop.f32.mrb[0].mxu0
    %655 = vdwg.mxu0
    %s656 = scalar_lea.vmem [#allocation5], 384
    %v657 = vld [vmem:[%s656] sm:$0xff]
    %v658 = vld [vmem:[%s656 + $0x8] sm:$0xff]
    %v659 = vld [vmem:[%s656 + $0x10] sm:$0xff]
    %v660 = vld [vmem:[%s656 + $0x18] sm:$0xff]
    %v661 = vld [vmem:[%s656 + $0x20] sm:$0xff]
    %v662 = vld [vmem:[%s656 + $0x28] sm:$0xff]
    %v663 = vld [vmem:[%s656 + $0x30] sm:$0xff]
    %v664 = vld [vmem:[%s656 + $0x38] sm:$0xff]
    %v665 = vld [vmem:[%s656 + $0x40] sm:$0xff]
    %v666 = vld [vmem:[%s656 + $0x48] sm:$0xff]
    %v667 = vld [vmem:[%s656 + $0x50] sm:$0xff]
    %v668 = vld [vmem:[%s656 + $0x58] sm:$0xff]
    %v669 = vld [vmem:[%s656 + $0x60] sm:$0xff]
    %v670 = vld [vmem:[%s656 + $0x68] sm:$0xff]
    %v671 = vld [vmem:[%s656 + $0x70] sm:$0xff]
    %v672 = vld [vmem:[%s656 + $0x78] sm:$0xff]
    %v673 = vld [vmem:[%s4 + $0x3] sm:$0x1]
    %v674 = vlaneseq
    %v675 = vshrl.u32 %v674, 7
    %v676 = vsub.s32 0, %v675
    %v677 = vrot.slane %v673, %v676
    %678 = vmatprep.subr.mxu0 0.0
    %679 = vmatpush1.msra.mxu0 %v657
    %680 = vmatprep.subr.mxu0 0.0
    %681 = vmatpush1.msra.mxu0 %v658
    %682 = vmatprep.subr.mxu0 0.0
    %683 = vmatpush1.msra.mxu0 %v659
    %684 = vmatprep.subr.mxu0 0.0
    %685 = vmatpush1.msra.mxu0 %v660
    %686 = vmatprep.subr.mxu0 0.0
    %687 = vmatpush1.msra.mxu0 %v661
    %688 = vmatprep.subr.mxu0 0.0
    %689 = vmatpush1.msra.mxu0 %v662
    %690 = vmatprep.subr.mxu0 0.0
    %691 = vmatpush1.msra.mxu0 %v663
    %692 = vmatprep.subr.mxu0 0.0
    %693 = vmatpush1.msra.mxu0 %v664
    %694 = vmatprep.subr.mxu0 0.0
    %695 = vmatpush1.msra.mxu0 %v665
    %696 = vmatprep.subr.mxu0 0.0
    %697 = vmatpush1.msra.mxu0 %v666
    %698 = vmatprep.subr.mxu0 0.0
    %699 = vmatpush1.msra.mxu0 %v667
    %700 = vmatprep.subr.mxu0 0.0
    %701 = vmatpush1.msra.mxu0 %v668
    %702 = vmatprep.subr.mxu0 0.0
    %703 = vmatpush1.msra.mxu0 %v669
    %704 = vmatprep.subr.mxu0 0.0
    %705 = vmatpush1.msra.mxu0 %v670
    %706 = vmatprep.subr.mxu0 0.0
    %707 = vmatpush1.msra.mxu0 %v671
    %708 = vmatprep.subr.mxu0 0.0
    %709 = vmatpush1.msra.mxu0 %v672
    %710 = vmatprep.subr.mxu0 0.0
    %711 = vmatpush1.msra.mxu0 0.0
    %712 = vmatprep.subr.mxu0 0.0
    %713 = vmatpush1.msra.mxu0 0.0
    %714 = vmatprep.subr.mxu0 0.0
    %715 = vmatpush1.msra.mxu0 0.0
    %716 = vmatprep.subr.mxu0 0.0
    %717 = vmatpush1.msra.mxu0 0.0
    %718 = vmatprep.subr.mxu0 0.0
    %719 = vmatpush1.msra.mxu0 0.0
    %720 = vmatprep.subr.mxu0 0.0
    %721 = vmatpush1.msra.mxu0 0.0
    %722 = vmatprep.subr.mxu0 0.0
    %723 = vmatpush1.msra.mxu0 0.0
    %724 = vmatprep.subr.mxu0 0.0
    %725 = vmatpush1.msra.mxu0 0.0
    %726 = vmatprep.subr.mxu0 0.0
    %727 = vmatpush1.msra.mxu0 0.0
    %728 = vmatprep.subr.mxu0 0.0
    %729 = vmatpush1.msra.mxu0 0.0
    %730 = vmatprep.subr.mxu0 0.0
    %731 = vmatpush1.msra.mxu0 0.0
    %732 = vmatprep.subr.mxu0 0.0
    %733 = vmatpush1.msra.mxu0 0.0
    %734 = vmatprep.subr.mxu0 0.0
    %735 = vmatpush1.msra.mxu0 0.0
    %736 = vmatprep.subr.mxu0 0.0
    %737 = vmatpush1.msra.mxu0 0.0
    %738 = vmatprep.subr.mxu0 0.0
    %739 = vmatpush1.msra.mxu0 0.0
    %740 = vmatprep.subr.mxu0 0.0
    %741 = vmatpush1.msra.mxu0 0.0
    %742 = vmatprep.mubr.f32.mxu0 0.0
    %743 = vmatmul.mubr.f32.gmra.mrb[0].mxu0 %v648
    %v744 = vpop.f32.mrb[0].mxu0
    %v745 = vadd.f32 %v677, %v744
    %v746 = vpop.f32.mrb[0].mxu0
    %747 = vmatprep.mubr.f32.mxu0 0.0
    %748 = vmatmul.mubr.f32.gmra.mrb[0].mxu0 %v653
    %v749 = vpop.f32.mrb[0].mxu0
    %v750 = vadd.f32 %v677, %v749
    %v751 = vpop.f32.mrb[0].mxu0
    %752 = vdwg.mxu0
    %v753 = vmax.f32 %v745, 0.0
    %v754 = vmax.f32 %v750, 0.0
    %755 = vmatprep.subr.mxu0 0.0
    %756 = vmatpush1.msra.mxu0 %v753
    %757 = vmatprep.subr.mxu0 0.0
    %758 = vmatpush1.msra.mxu0 %v754
    %759 = vmatprep.subr.mxu0 0.0
    %760 = vmatpush1.msra.mxu0 0.0
    %761 = vmatprep.subr.mxu0 0.0
    %762 = vmatpush1.msra.mxu0 0.0
    %763 = vmatprep.subr.mxu0 0.0
    %764 = vmatpush1.msra.mxu0 0.0
    %765 = vmatprep.subr.mxu0 0.0
    %766 = vmatpush1.msra.mxu0 0.0
    %767 = vmatprep.subr.mxu0 0.0
    %768 = vmatpush1.msra.mxu0 0.0
    %769 = vmatprep.subr.mxu0 0.0
    %770 = vmatpush1.msra.mxu0 0.0
    %771 = vmatprep.subr.mxu0 0.0
    %772 = vmatpush1.msra.mxu0 0.0
    %773 = vmatprep.subr.mxu0 0.0
    %774 = vmatpush1.msra.mxu0 0.0
    %775 = vmatprep.subr.mxu0 0.0
    %776 = vmatpush1.msra.mxu0 0.0
    %777 = vmatprep.subr.mxu0 0.0
    %778 = vmatpush1.msra.mxu0 0.0
    %779 = vmatprep.subr.mxu0 0.0
    %780 = vmatpush1.msra.mxu0 0.0
    %781 = vmatprep.subr.mxu0 0.0
    %782 = vmatpush1.msra.mxu0 0.0
    %783 = vmatprep.subr.mxu0 0.0
    %784 = vmatpush1.msra.mxu0 0.0
    %785 = vmatprep.subr.mxu0 0.0
    %786 = vmatpush1.msra.mxu0 0.0
    %787 = vmatprep.subr.mxu0 0.0
    %788 = vmatpush1.msra.mxu0 0.0
    %789 = vmatprep.subr.mxu0 0.0
    %790 = vmatpush1.msra.mxu0 0.0
    %791 = vmatprep.subr.mxu0 0.0
    %792 = vmatpush1.msra.mxu0 0.0
    %793 = vmatprep.subr.mxu0 0.0
    %794 = vmatpush1.msra.mxu0 0.0
    %795 = vmatprep.subr.mxu0 0.0
    %796 = vmatpush1.msra.mxu0 0.0
    %797 = vmatprep.subr.mxu0 0.0
    %798 = vmatpush1.msra.mxu0 0.0
    %799 = vmatprep.subr.mxu0 0.0
    %800 = vmatpush1.msra.mxu0 0.0
    %801 = vmatprep.subr.mxu0 0.0
    %802 = vmatpush1.msra.mxu0 0.0
    %803 = vmatprep.subr.mxu0 0.0
    %804 = vmatpush1.msra.mxu0 0.0
    %805 = vmatprep.subr.mxu0 0.0
    %806 = vmatpush1.msra.mxu0 0.0
    %807 = vmatprep.subr.mxu0 0.0
    %808 = vmatpush1.msra.mxu0 0.0
    %809 = vmatprep.subr.mxu0 0.0
    %810 = vmatpush1.msra.mxu0 0.0
    %811 = vmatprep.subr.mxu0 0.0
    %812 = vmatpush1.msra.mxu0 0.0
    %813 = vmatprep.subr.mxu0 0.0
    %814 = vmatpush1.msra.mxu0 0.0
    %815 = vmatprep.subr.mxu0 0.0
    %816 = vmatpush1.msra.mxu0 0.0
    %817 = vmatprep.subr.mxu0 0.0
    %818 = vmatpush1.msra.mxu0 0.0
    %819 = vmatprep.mubr.f32.mxu0 0.0
    %820 = vmatmul.mubr.f32.gmra.mrb[0].mxu0 %v55
    %v821 = vpop.f32.mrb[0].mxu0
    %v822 = vadd.f32 0.0, %v821
    %v823 = vpop.f32.mrb[0].mxu0
    %824 = vmatprep.mubr.f32.mxu0 0.0
    %825 = vmatmul.mubr.f32.gmra.mrb[0].mxu0 %v58
    %v826 = vpop.f32.mrb[0].mxu0
    %v827 = vadd.f32 0.0, %v826
    %v828 = vpop.f32.mrb[0].mxu0
    %829 = vdwg.mxu0
    %s830 = scalar_lea.vmem [#allocation5], 512
    %v831 = vld [vmem:[%s830] sm:$0xff]
    %v832 = vld [vmem:[%s830 + $0x8] sm:$0xff]
    %v833 = vld [vmem:[%s830 + $0x10] sm:$0xff]
    %v834 = vld [vmem:[%s830 + $0x18] sm:$0xff]
    %v835 = vld [vmem:[%s830 + $0x20] sm:$0xff]
    %v836 = vld [vmem:[%s830 + $0x28] sm:$0xff]
    %v837 = vld [vmem:[%s830 + $0x30] sm:$0xff]
    %v838 = vld [vmem:[%s830 + $0x38] sm:$0xff]
    %v839 = vld [vmem:[%s830 + $0x40] sm:$0xff]
    %v840 = vld [vmem:[%s830 + $0x48] sm:$0xff]
    %v841 = vld [vmem:[%s830 + $0x50] sm:$0xff]
    %v842 = vld [vmem:[%s830 + $0x58] sm:$0xff]
    %v843 = vld [vmem:[%s830 + $0x60] sm:$0xff]
    %v844 = vld [vmem:[%s830 + $0x68] sm:$0xff]
    %v845 = vld [vmem:[%s830 + $0x70] sm:$0xff]
    %v846 = vld [vmem:[%s830 + $0x78] sm:$0xff]
    %v847 = vld [vmem:[%s4 + $0x4] sm:$0x1]
    %v848 = vlaneseq
    %v849 = vshrl.u32 %v848, 7
    %v850 = vsub.s32 0, %v849
    %v851 = vrot.slane %v847, %v850
    %852 = vmatprep.subr.mxu0 0.0
    %853 = vmatpush1.msra.mxu0 %v831
    %854 = vmatprep.subr.mxu0 0.0
    %855 = vmatpush1.msra.mxu0 %v832
    %856 = vmatprep.subr.mxu0 0.0
    %857 = vmatpush1.msra.mxu0 %v833
    %858 = vmatprep.subr.mxu0 0.0
    %859 = vmatpush1.msra.mxu0 %v834
    %860 = vmatprep.subr.mxu0 0.0
    %861 = vmatpush1.msra.mxu0 %v835
    %862 = vmatprep.subr.mxu0 0.0
    %863 = vmatpush1.msra.mxu0 %v836
    %864 = vmatprep.subr.mxu0 0.0
    %865 = vmatpush1.msra.mxu0 %v837
    %866 = vmatprep.subr.mxu0 0.0
    %867 = vmatpush1.msra.mxu0 %v838
    %868 = vmatprep.subr.mxu0 0.0
    %869 = vmatpush1.msra.mxu0 %v839
    %870 = vmatprep.subr.mxu0 0.0
    %871 = vmatpush1.msra.mxu0 %v840
    %872 = vmatprep.subr.mxu0 0.0
    %873 = vmatpush1.msra.mxu0 %v841
    %874 = vmatprep.subr.mxu0 0.0
    %875 = vmatpush1.msra.mxu0 %v842
    %876 = vmatprep.subr.mxu0 0.0
    %877 = vmatpush1.msra.mxu0 %v843
    %878 = vmatprep.subr.mxu0 0.0
    %879 = vmatpush1.msra.mxu0 %v844
    %880 = vmatprep.subr.mxu0 0.0
    %881 = vmatpush1.msra.mxu0 %v845
    %882 = vmatprep.subr.mxu0 0.0
    %883 = vmatpush1.msra.mxu0 %v846
    %884 = vmatprep.subr.mxu0 0.0
    %885 = vmatpush1.msra.mxu0 0.0
    %886 = vmatprep.subr.mxu0 0.0
    %887 = vmatpush1.msra.mxu0 0.0
    %888 = vmatprep.subr.mxu0 0.0
    %889 = vmatpush1.msra.mxu0 0.0
    %890 = vmatprep.subr.mxu0 0.0
    %891 = vmatpush1.msra.mxu0 0.0
    %892 = vmatprep.subr.mxu0 0.0
    %893 = vmatpush1.msra.mxu0 0.0
    %894 = vmatprep.subr.mxu0 0.0
    %895 = vmatpush1.msra.mxu0 0.0
    %896 = vmatprep.subr.mxu0 0.0
    %897 = vmatpush1.msra.mxu0 0.0
    %898 = vmatprep.subr.mxu0 0.0
    %899 = vmatpush1.msra.mxu0 0.0
    %900 = vmatprep.subr.mxu0 0.0
    %901 = vmatpush1.msra.mxu0 0.0
    %902 = vmatprep.subr.mxu0 0.0
    %903 = vmatpush1.msra.mxu0 0.0
    %904 = vmatprep.subr.mxu0 0.0
    %905 = vmatpush1.msra.mxu0 0.0
    %906 = vmatprep.subr.mxu0 0.0
    %907 = vmatpush1.msra.mxu0 0.0
    %908 = vmatprep.subr.mxu0 0.0
    %909 = vmatpush1.msra.mxu0 0.0
    %910 = vmatprep.subr.mxu0 0.0
    %911 = vmatpush1.msra.mxu0 0.0
    %912 = vmatprep.subr.mxu0 0.0
    %913 = vmatpush1.msra.mxu0 0.0
    %914 = vmatprep.subr.mxu0 0.0
    %915 = vmatpush1.msra.mxu0 0.0
    %916 = vmatprep.mubr.f32.mxu0 0.0
    %917 = vmatmul.mubr.f32.gmra.mrb[0].mxu0 %v822
    %v918 = vpop.f32.mrb[0].mxu0
    %v919 = vadd.f32 %v851, %v918
    %v920 = vpop.f32.mrb[0].mxu0
    %921 = vmatprep.mubr.f32.mxu0 0.0
    %922 = vmatmul.mubr.f32.gmra.mrb[0].mxu0 %v827
    %v923 = vpop.f32.mrb[0].mxu0
    %v924 = vadd.f32 %v851, %v923
    %v925 = vpop.f32.mrb[0].mxu0
    %926 = vdwg.mxu0
    %v927 = vmax.f32 %v919, 0.0
    %v928 = vmax.f32 %v924, 0.0
    %929 = vmatprep.subr.mxu0 0.0
    %930 = vmatpush1.msra.mxu0 %v927
    %931 = vmatprep.subr.mxu0 0.0
    %932 = vmatpush1.msra.mxu0 %v928
    %933 = vmatprep.subr.mxu0 0.0
    %934 = vmatpush1.msra.mxu0 0.0
    %935 = vmatprep.subr.mxu0 0.0
    %936 = vmatpush1.msra.mxu0 0.0
    %937 = vmatprep.subr.mxu0 0.0
    %938 = vmatpush1.msra.mxu0 0.0
    %939 = vmatprep.subr.mxu0 0.0
    %940 = vmatpush1.msra.mxu0 0.0
    %941 = vmatprep.subr.mxu0 0.0
    %942 = vmatpush1.msra.mxu0 0.0
    %943 = vmatprep.subr.mxu0 0.0
    %944 = vmatpush1.msra.mxu0 0.0
    %945 = vmatprep.subr.mxu0 0.0
    %946 = vmatpush1.msra.mxu0 0.0
    %947 = vmatprep.subr.mxu0 0.0
    %948 = vmatpush1.msra.mxu0 0.0
    %949 = vmatprep.subr.mxu0 0.0
    %950 = vmatpush1.msra.mxu0 0.0
    %951 = vmatprep.subr.mxu0 0.0
    %952 = vmatpush1.msra.mxu0 0.0
    %953 = vmatprep.subr.mxu0 0.0
    %954 = vmatpush1.msra.mxu0 0.0
    %955 = vmatprep.subr.mxu0 0.0
    %956 = vmatpush1.msra.mxu0 0.0
    %957 = vmatprep.subr.mxu0 0.0
    %958 = vmatpush1.msra.mxu0 0.0
    %959 = vmatprep.subr.mxu0 0.0
    %960 = vmatpush1.msra.mxu0 0.0
    %961 = vmatprep.subr.mxu0 0.0
    %962 = vmatpush1.msra.mxu0 0.0
    %963 = vmatprep.subr.mxu0 0.0
    %964 = vmatpush1.msra.mxu0 0.0
    %965 = vmatprep.subr.mxu0 0.0
    %966 = vmatpush1.msra.mxu0 0.0
    %967 = vmatprep.subr.mxu0 0.0
    %968 = vmatpush1.msra.mxu0 0.0
    %969 = vmatprep.subr.mxu0 0.0
    %970 = vmatpush1.msra.mxu0 0.0
    %971 = vmatprep.subr.mxu0 0.0
    %972 = vmatpush1.msra.mxu0 0.0
    %973 = vmatprep.subr.mxu0 0.0
    %974 = vmatpush1.msra.mxu0 0.0
    %975 = vmatprep.subr.mxu0 0.0
    %976 = vmatpush1.msra.mxu0 0.0
    %977 = vmatprep.subr.mxu0 0.0
    %978 = vmatpush1.msra.mxu0 0.0
    %979 = vmatprep.subr.mxu0 0.0
    %980 = vmatpush1.msra.mxu0 0.0
    %981 = vmatprep.subr.mxu0 0.0
    %982 = vmatpush1.msra.mxu0 0.0
    %983 = vmatprep.subr.mxu0 0.0
    %984 = vmatpush1.msra.mxu0 0.0
    %985 = vmatprep.subr.mxu0 0.0
    %986 = vmatpush1.msra.mxu0 0.0
    %987 = vmatprep.subr.mxu0 0.0
    %988 = vmatpush1.msra.mxu0 0.0
    %989 = vmatprep.subr.mxu0 0.0
    %990 = vmatpush1.msra.mxu0 0.0
    %991 = vmatprep.subr.mxu0 0.0
    %992 = vmatpush1.msra.mxu0 0.0
    %993 = vmatprep.mubr.f32.mxu0 0.0
    %994 = vmatmul.mubr.f32.gmra.mrb[0].mxu0 %v55
    %v995 = vpop.f32.mrb[0].mxu0
    %v996 = vadd.f32 0.0, %v995
    %v997 = vpop.f32.mrb[0].mxu0
    %998 = vmatprep.mubr.f32.mxu0 0.0
    %999 = vmatmul.mubr.f32.gmra.mrb[0].mxu0 %v58
    %v1000 = vpop.f32.mrb[0].mxu0
    %v1001 = vadd.f32 0.0, %v1000
    %v1002 = vpop.f32.mrb[0].mxu0
    %1003 = vdwg.mxu0
    %s1004 = scalar_lea.vmem [#allocation5], 640
    %v1005 = vld [vmem:[%s1004] sm:$0xff]
    %v1006 = vld [vmem:[%s1004 + $0x8] sm:$0xff]
    %v1007 = vld [vmem:[%s1004 + $0x10] sm:$0xff]
    %v1008 = vld [vmem:[%s1004 + $0x18] sm:$0xff]
    %v1009 = vld [vmem:[%s1004 + $0x20] sm:$0xff]
    %v1010 = vld [vmem:[%s1004 + $0x28] sm:$0xff]
    %v1011 = vld [vmem:[%s1004 + $0x30] sm:$0xff]
    %v1012 = vld [vmem:[%s1004 + $0x38] sm:$0xff]
    %v1013 = vld [vmem:[%s1004 + $0x40] sm:$0xff]
    %v1014 = vld [vmem:[%s1004 + $0x48] sm:$0xff]
    %v1015 = vld [vmem:[%s1004 + $0x50] sm:$0xff]
    %v1016 = vld [vmem:[%s1004 + $0x58] sm:$0xff]
    %v1017 = vld [vmem:[%s1004 + $0x60] sm:$0xff]
    %v1018 = vld [vmem:[%s1004 + $0x68] sm:$0xff]
    %v1019 = vld [vmem:[%s1004 + $0x70] sm:$0xff]
    %v1020 = vld [vmem:[%s1004 + $0x78] sm:$0xff]
    %v1021 = vld [vmem:[%s4 + $0x5] sm:$0x1]
    %v1022 = vlaneseq
    %v1023 = vshrl.u32 %v1022, 7
    %v1024 = vsub.s32 0, %v1023
    %v1025 = vrot.slane %v1021, %v1024
    %1026 = vmatprep.subr.mxu0 0.0
    %1027 = vmatpush1.msra.mxu0 %v1005
    %1028 = vmatprep.subr.mxu0 0.0
    %1029 = vmatpush1.msra.mxu0 %v1006
    %1030 = vmatprep.subr.mxu0 0.0
    %1031 = vmatpush1.msra.mxu0 %v1007
    %1032 = vmatprep.subr.mxu0 0.0
    %1033 = vmatpush1.msra.mxu0 %v1008
    %1034 = vmatprep.subr.mxu0 0.0
    %1035 = vmatpush1.msra.mxu0 %v1009
    %1036 = vmatprep.subr.mxu0 0.0
    %1037 = vmatpush1.msra.mxu0 %v1010
    %1038 = vmatprep.subr.mxu0 0.0
    %1039 = vmatpush1.msra.mxu0 %v1011
    %1040 = vmatprep.subr.mxu0 0.0
    %1041 = vmatpush1.msra.mxu0 %v1012
    %1042 = vmatprep.subr.mxu0 0.0
    %1043 = vmatpush1.msra.mxu0 %v1013
    %1044 = vmatprep.subr.mxu0 0.0
    %1045 = vmatpush1.msra.mxu0 %v1014
    %1046 = vmatprep.subr.mxu0 0.0
    %1047 = vmatpush1.msra.mxu0 %v1015
    %1048 = vmatprep.subr.mxu0 0.0
    %1049 = vmatpush1.msra.mxu0 %v1016
    %1050 = vmatprep.subr.mxu0 0.0
    %1051 = vmatpush1.msra.mxu0 %v1017
    %1052 = vmatprep.subr.mxu0 0.0
    %1053 = vmatpush1.msra.mxu0 %v1018
    %1054 = vmatprep.subr.mxu0 0.0
    %1055 = vmatpush1.msra.mxu0 %v1019
    %1056 = vmatprep.subr.mxu0 0.0
    %1057 = vmatpush1.msra.mxu0 %v1020
    %1058 = vmatprep.subr.mxu0 0.0
    %1059 = vmatpush1.msra.mxu0 0.0
    %1060 = vmatprep.subr.mxu0 0.0
    %1061 = vmatpush1.msra.mxu0 0.0
    %1062 = vmatprep.subr.mxu0 0.0
    %1063 = vmatpush1.msra.mxu0 0.0
    %1064 = vmatprep.subr.mxu0 0.0
    %1065 = vmatpush1.msra.mxu0 0.0
    %1066 = vmatprep.subr.mxu0 0.0
    %1067 = vmatpush1.msra.mxu0 0.0
    %1068 = vmatprep.subr.mxu0 0.0
    %1069 = vmatpush1.msra.mxu0 0.0
    %1070 = vmatprep.subr.mxu0 0.0
    %1071 = vmatpush1.msra.mxu0 0.0
    %1072 = vmatprep.subr.mxu0 0.0
    %1073 = vmatpush1.msra.mxu0 0.0
    %1074 = vmatprep.subr.mxu0 0.0
    %1075 = vmatpush1.msra.mxu0 0.0
    %1076 = vmatprep.subr.mxu0 0.0
    %1077 = vmatpush1.msra.mxu0 0.0
    %1078 = vmatprep.subr.mxu0 0.0
    %1079 = vmatpush1.msra.mxu0 0.0
    %1080 = vmatprep.subr.mxu0 0.0
    %1081 = vmatpush1.msra.mxu0 0.0
    %1082 = vmatprep.subr.mxu0 0.0
    %1083 = vmatpush1.msra.mxu0 0.0
    %1084 = vmatprep.subr.mxu0 0.0
    %1085 = vmatpush1.msra.mxu0 0.0
    %1086 = vmatprep.subr.mxu0 0.0
    %1087 = vmatpush1.msra.mxu0 0.0
    %1088 = vmatprep.subr.mxu0 0.0
    %1089 = vmatpush1.msra.mxu0 0.0
    %1090 = vmatprep.mubr.f32.mxu0 0.0
    %1091 = vmatmul.mubr.f32.gmra.mrb[0].mxu0 %v996
    %v1092 = vpop.f32.mrb[0].mxu0
    %v1093 = vadd.f32 %v1025, %v1092
    %v1094 = vpop.f32.mrb[0].mxu0
    %1095 = vmatprep.mubr.f32.mxu0 0.0
    %1096 = vmatmul.mubr.f32.gmra.mrb[0].mxu0 %v1001
    %v1097 = vpop.f32.mrb[0].mxu0
    %v1098 = vadd.f32 %v1025, %v1097
    %v1099 = vpop.f32.mrb[0].mxu0
    %1100 = vdwg.mxu0
    %v1101 = vmax.f32 %v1093, 0.0
    %v1102 = vmax.f32 %v1098, 0.0
    %v1103 = vld [vmem:[%s2] sm:$0xff]
    %v1104 = vld [vmem:[%s2 + $0x8] sm:$0xff]
    %v1105 = vlaneseq
    %v1106 = vshrl.u32 %v1105, 7
    %v1107 = vsub.s32 0, %v1106
    %v1108 = vrot.slane %v1103, %v1107
    %1110 = vbcast.lane.b32.xlu0 %v1108, 256
    %v1111 = vpop.permute.xlu0 %1110
    %v1112 = vlaneseq
    %v1113 = vshrl.u32 %v1112, 7
    %v1114 = vsub.s32 1, %v1113
    %v1115 = vrot.slane %v1103, %v1114
    %1117 = vbcast.lane.b32.xlu0 %v1115, 256
    %v1118 = vpop.permute.xlu0 %1117
    %v1119 = vlaneseq
    %v1120 = vshrl.u32 %v1119, 7
    %v1121 = vsub.s32 2, %v1120
    %v1122 = vrot.slane %v1103, %v1121
    %1124 = vbcast.lane.b32.xlu0 %v1122, 256
    %v1125 = vpop.permute.xlu0 %1124
    %v1126 = vlaneseq
    %v1127 = vshrl.u32 %v1126, 7
    %v1128 = vsub.s32 3, %v1127
    %v1129 = vrot.slane %v1103, %v1128
    %1131 = vbcast.lane.b32.xlu0 %v1129, 256
    %v1132 = vpop.permute.xlu0 %1131
    %v1133 = vlaneseq
    %v1134 = vshrl.u32 %v1133, 7
    %v1135 = vsub.s32 4, %v1134
    %v1136 = vrot.slane %v1103, %v1135
    %1138 = vbcast.lane.b32.xlu0 %v1136, 256
    %v1139 = vpop.permute.xlu0 %1138
    %v1140 = vlaneseq
    %v1141 = vshrl.u32 %v1140, 7
    %v1142 = vsub.s32 5, %v1141
    %v1143 = vrot.slane %v1103, %v1142
    %1145 = vbcast.lane.b32.xlu0 %v1143, 256
    %v1146 = vpop.permute.xlu0 %1145
    %v1147 = vlaneseq
    %v1148 = vshrl.u32 %v1147, 7
    %v1149 = vsub.s32 6, %v1148
    %v1150 = vrot.slane %v1103, %v1149
    %1152 = vbcast.lane.b32.xlu0 %v1150, 256
    %v1153 = vpop.permute.xlu0 %1152
    %v1154 = vlaneseq
    %v1155 = vshrl.u32 %v1154, 7
    %v1156 = vsub.s32 7, %v1155
    %v1157 = vrot.slane %v1103, %v1156
    %1159 = vbcast.lane.b32.xlu0 %v1157, 256
    %v1160 = vpop.permute.xlu0 %1159
    %v1161 = vlaneseq
    %v1162 = vshrl.u32 %v1161, 7
    %v1163 = vsub.s32 0, %v1162
    %v1164 = vrot.slane %v1104, %v1163
    %1166 = vbcast.lane.b32.xlu0 %v1164, 256
    %v1167 = vpop.permute.xlu0 %1166
    %v1168 = vlaneseq
    %v1169 = vshrl.u32 %v1168, 7
    %v1170 = vsub.s32 1, %v1169
    %v1171 = vrot.slane %v1104, %v1170
    %1173 = vbcast.lane.b32.xlu0 %v1171, 256
    %v1174 = vpop.permute.xlu0 %1173
    %v1175 = vlaneseq
    %v1176 = vshrl.u32 %v1175, 7
    %v1177 = vsub.s32 2, %v1176
    %v1178 = vrot.slane %v1104, %v1177
    %1180 = vbcast.lane.b32.xlu0 %v1178, 256
    %v1181 = vpop.permute.xlu0 %1180
    %v1182 = vlaneseq
    %v1183 = vshrl.u32 %v1182, 7
    %v1184 = vsub.s32 3, %v1183
    %v1185 = vrot.slane %v1104, %v1184
    %1187 = vbcast.lane.b32.xlu0 %v1185, 256
    %v1188 = vpop.permute.xlu0 %1187
    %v1189 = vlaneseq
    %v1190 = vshrl.u32 %v1189, 7
    %v1191 = vsub.s32 4, %v1190
    %v1192 = vrot.slane %v1104, %v1191
    %1194 = vbcast.lane.b32.xlu0 %v1192, 256
    %v1195 = vpop.permute.xlu0 %1194
    %v1196 = vlaneseq
    %v1197 = vshrl.u32 %v1196, 7
    %v1198 = vsub.s32 5, %v1197
    %v1199 = vrot.slane %v1104, %v1198
    %1201 = vbcast.lane.b32.xlu0 %v1199, 256
    %v1202 = vpop.permute.xlu0 %1201
    %v1203 = vlaneseq
    %v1204 = vshrl.u32 %v1203, 7
    %v1205 = vsub.s32 6, %v1204
    %v1206 = vrot.slane %v1104, %v1205
    %1208 = vbcast.lane.b32.xlu0 %v1206, 256
    %v1209 = vpop.permute.xlu0 %1208
    %v1210 = vlaneseq
    %v1211 = vshrl.u32 %v1210, 7
    %v1212 = vsub.s32 7, %v1211
    %v1213 = vrot.slane %v1104, %v1212
    %1215 = vbcast.lane.b32.xlu0 %v1213, 256
    %v1216 = vpop.permute.xlu0 %1215
    %v1219 = vcombine.high %v1101, %v1101
    %v1221 = vunpack.c.l.s4 1966171168
    %v1222 = vunpack.c.0.s8 %v1221
    %v1223 = vlaneseq
    %v1224 = vshrl.u32 %v1223, 7
    %v1225 = vsub.s32 %v1222, %v1224
    %v1226 = vrot.slane %v1101, %v1225
    %v1228 = vunpack.c.l.s4 1966171168
    %v1229 = vunpack.c.0.s8 %v1228
    %v1230 = vlaneseq
    %v1231 = vshrl.u32 %v1230, 7
    %v1232 = vsub.s32 %v1229, %v1231
    %v1233 = vrot.slane %v1219, %v1232
    %v1234 = vcombine.high %v1226, %v1226
    %v1235 = vcombine.high %v1233, %v1233
    %v1237 = vunpack.c.l.s4 1966171168
    %v1238 = vunpack.c.0.s8 %v1237
    %v1239 = vlaneseq
    %v1240 = vshrl.u32 %v1239, 7
    %v1241 = vsub.s32 %v1238, %v1240
    %v1242 = vrot.slane %v1226, %v1241
    %v1244 = vunpack.c.l.s4 1966171168
    %v1245 = vunpack.c.0.s8 %v1244
    %v1246 = vlaneseq
    %v1247 = vshrl.u32 %v1246, 7
    %v1248 = vsub.s32 %v1245, %v1247
    %v1249 = vrot.slane %v1233, %v1248
    %v1251 = vunpack.c.l.s4 1966171168
    %v1252 = vunpack.c.0.s8 %v1251
    %v1253 = vlaneseq
    %v1254 = vshrl.u32 %v1253, 7
    %v1255 = vsub.s32 %v1252, %v1254
    %v1256 = vrot.slane %v1234, %v1255
    %v1258 = vunpack.c.l.s4 1966171168
    %v1259 = vunpack.c.0.s8 %v1258
    %v1260 = vlaneseq
    %v1261 = vshrl.u32 %v1260, 7
    %v1262 = vsub.s32 %v1259, %v1261
    %v1263 = vrot.slane %v1235, %v1262
    %v1264 = vcombine.high %v1242, %v1242
    %v1265 = vcombine.high %v1249, %v1249
    %v1266 = vcombine.high %v1256, %v1256
    %v1267 = vcombine.high %v1263, %v1263
    %v1268 = vcombine.high %v1102, %v1102
    %v1270 = vunpack.c.l.s4 1966171168
    %v1271 = vunpack.c.0.s8 %v1270
    %v1272 = vlaneseq
    %v1273 = vshrl.u32 %v1272, 7
    %v1274 = vsub.s32 %v1271, %v1273
    %v1275 = vrot.slane %v1102, %v1274
    %v1277 = vunpack.c.l.s4 1966171168
    %v1278 = vunpack.c.0.s8 %v1277
    %v1279 = vlaneseq
    %v1280 = vshrl.u32 %v1279, 7
    %v1281 = vsub.s32 %v1278, %v1280
    %v1282 = vrot.slane %v1268, %v1281
    %v1283 = vcombine.high %v1275, %v1275
    %v1284 = vcombine.high %v1282, %v1282
    %v1286 = vunpack.c.l.s4 1966171168
    %v1287 = vunpack.c.0.s8 %v1286
    %v1288 = vlaneseq
    %v1289 = vshrl.u32 %v1288, 7
    %v1290 = vsub.s32 %v1287, %v1289
    %v1291 = vrot.slane %v1275, %v1290
    %v1293 = vunpack.c.l.s4 1966171168
    %v1294 = vunpack.c.0.s8 %v1293
    %v1295 = vlaneseq
    %v1296 = vshrl.u32 %v1295, 7
    %v1297 = vsub.s32 %v1294, %v1296
    %v1298 = vrot.slane %v1282, %v1297
    %v1300 = vunpack.c.l.s4 1966171168
    %v1301 = vunpack.c.0.s8 %v1300
    %v1302 = vlaneseq
    %v1303 = vshrl.u32 %v1302, 7
    %v1304 = vsub.s32 %v1301, %v1303
    %v1305 = vrot.slane %v1283, %v1304
    %v1307 = vunpack.c.l.s4 1966171168
    %v1308 = vunpack.c.0.s8 %v1307
    %v1309 = vlaneseq
    %v1310 = vshrl.u32 %v1309, 7
    %v1311 = vsub.s32 %v1308, %v1310
    %v1312 = vrot.slane %v1284, %v1311
    %v1313 = vcombine.high %v1291, %v1291
    %v1314 = vcombine.high %v1298, %v1298
    %v1315 = vcombine.high %v1305, %v1305
    %v1316 = vcombine.high %v1312, %v1312
    %v1317 = vlaneseq
    %v1318 = vshrl.u32 %v1317, 7
    %v1319 = vsub.s32 0, %v1318
    %v1320 = vrot.slane %v1242, %v1319
    %v1321 = vlaneseq
    %v1322 = vshrl.u32 %v1321, 7
    %v1323 = vsub.s32 0, %v1322
    %v1324 = vrot.slane %v1256, %v1323
    %v1325 = vlaneseq
    %v1326 = vshrl.u32 %v1325, 7
    %v1327 = vsub.s32 0, %v1326
    %v1328 = vrot.slane %v1264, %v1327
    %v1329 = vlaneseq
    %v1330 = vshrl.u32 %v1329, 7
    %v1331 = vsub.s32 0, %v1330
    %v1332 = vrot.slane %v1266, %v1331
    %v1333 = vlaneseq
    %v1334 = vshrl.u32 %v1333, 7
    %v1335 = vsub.s32 0, %v1334
    %v1336 = vrot.slane %v1249, %v1335
    %v1337 = vlaneseq
    %v1338 = vshrl.u32 %v1337, 7
    %v1339 = vsub.s32 0, %v1338
    %v1340 = vrot.slane %v1263, %v1339
    %v1341 = vlaneseq
    %v1342 = vshrl.u32 %v1341, 7
    %v1343 = vsub.s32 0, %v1342
    %v1344 = vrot.slane %v1265, %v1343
    %v1345 = vlaneseq
    %v1346 = vshrl.u32 %v1345, 7
    %v1347 = vsub.s32 0, %v1346
    %v1348 = vrot.slane %v1267, %v1347
    %v1349 = vlaneseq
    %v1350 = vshrl.u32 %v1349, 7
    %v1351 = vsub.s32 0, %v1350
    %v1352 = vrot.slane %v1291, %v1351
    %v1353 = vlaneseq
    %v1354 = vshrl.u32 %v1353, 7
    %v1355 = vsub.s32 0, %v1354
    %v1356 = vrot.slane %v1305, %v1355
    %v1357 = vlaneseq
    %v1358 = vshrl.u32 %v1357, 7
    %v1359 = vsub.s32 0, %v1358
    %v1360 = vrot.slane %v1313, %v1359
    %v1361 = vlaneseq
    %v1362 = vshrl.u32 %v1361, 7
    %v1363 = vsub.s32 0, %v1362
    %v1364 = vrot.slane %v1315, %v1363
    %v1365 = vlaneseq
    %v1366 = vshrl.u32 %v1365, 7
    %v1367 = vsub.s32 0, %v1366
    %v1368 = vrot.slane %v1298, %v1367
    %v1369 = vlaneseq
    %v1370 = vshrl.u32 %v1369, 7
    %v1371 = vsub.s32 0, %v1370
    %v1372 = vrot.slane %v1312, %v1371
    %v1373 = vlaneseq
    %v1374 = vshrl.u32 %v1373, 7
    %v1375 = vsub.s32 0, %v1374
    %v1376 = vrot.slane %v1314, %v1375
    %v1377 = vlaneseq
    %v1378 = vshrl.u32 %v1377, 7
    %v1379 = vsub.s32 0, %v1378
    %v1380 = vrot.slane %v1316, %v1379
    %v1397 = vmul.f32 %v1111, %v1320
    %v1398 = vmul.f32 %v1118, %v1324
    %v1399 = vmul.f32 %v1125, %v1328
    %v1400 = vmul.f32 %v1132, %v1332
    %v1401 = vmul.f32 %v1139, %v1336
    %v1402 = vmul.f32 %v1146, %v1340
    %v1403 = vmul.f32 %v1153, %v1344
    %v1404 = vmul.f32 %v1160, %v1348
    %v1405 = vmul.f32 %v1167, %v1352
    %v1406 = vmul.f32 %v1174, %v1356
    %v1407 = vmul.f32 %v1181, %v1360
    %v1408 = vmul.f32 %v1188, %v1364
    %v1409 = vmul.f32 %v1195, %v1368
    %v1410 = vmul.f32 %v1202, %v1372
    %v1411 = vmul.f32 %v1209, %v1376
    %v1412 = vmul.f32 %v1216, %v1380
    %v1413 = vmax.f32 %v1397, %v1401
    %v1414 = vmax.f32 %v1398, %v1402
    %v1415 = vmax.f32 %v1399, %v1403
    %v1416 = vmax.f32 %v1400, %v1404
    %v1417 = vmax.f32 %v1413, %v1405
    %v1418 = vmax.f32 %v1414, %v1406
    %v1419 = vmax.f32 %v1415, %v1407
    %v1420 = vmax.f32 %v1416, %v1408
    %v1421 = vmax.f32 %v1417, %v1409
    %v1422 = vmax.f32 %v1418, %v1410
    %v1423 = vmax.f32 %v1419, %v1411
    %v1424 = vmax.f32 %v1420, %v1412
    %v1425 = vmax.f32 %v1421, %v1422
    %v1426 = vmax.f32 %v1423, %v1424
    %v1427 = vmax.f32 %v1425, %v1426
    %s1428 = scalar_lea.vmem [#allocation5], 768
    %v1429 = vld [vmem:[%s1428] sm:$0xff]
    %v1430 = vld [vmem:[%s1428 + $0x8] sm:$0xff]
    %v1431 = vld [vmem:[%s1428 + $0x10] sm:$0xff]
    %v1432 = vld [vmem:[%s1428 + $0x18] sm:$0xff]
    %v1433 = vld [vmem:[%s1428 + $0x20] sm:$0xff]
    %v1434 = vld [vmem:[%s1428 + $0x28] sm:$0xff]
    %v1435 = vld [vmem:[%s1428 + $0x30] sm:$0xff]
    %v1436 = vld [vmem:[%s1428 + $0x38] sm:$0xff]
    %v1437 = vld [vmem:[%s1428 + $0x40] sm:$0xff]
    %v1438 = vld [vmem:[%s1428 + $0x48] sm:$0xff]
    %v1439 = vld [vmem:[%s1428 + $0x50] sm:$0xff]
    %v1440 = vld [vmem:[%s1428 + $0x58] sm:$0xff]
    %v1441 = vld [vmem:[%s1428 + $0x60] sm:$0xff]
    %v1442 = vld [vmem:[%s1428 + $0x68] sm:$0xff]
    %v1443 = vld [vmem:[%s1428 + $0x70] sm:$0xff]
    %v1444 = vld [vmem:[%s1428 + $0x78] sm:$0xff]
    %v1445 = vld [vmem:[%s4 + $0x6] sm:$0x1]
    %v1446 = vlaneseq
    %v1447 = vshrl.u32 %v1446, 7
    %v1448 = vsub.s32 0, %v1447
    %v1449 = vrot.slane %v1445, %v1448
    %1450 = vmatprep.subr.mxu0 0.0
    %1451 = vmatpush1.msra.mxu0 %v1429
    %1452 = vmatprep.subr.mxu0 0.0
    %1453 = vmatpush1.msra.mxu0 %v1430
    %1454 = vmatprep.subr.mxu0 0.0
    %1455 = vmatpush1.msra.mxu0 %v1431
    %1456 = vmatprep.subr.mxu0 0.0
    %1457 = vmatpush1.msra.mxu0 %v1432
    %1458 = vmatprep.subr.mxu0 0.0
    %1459 = vmatpush1.msra.mxu0 %v1433
    %1460 = vmatprep.subr.mxu0 0.0
    %1461 = vmatpush1.msra.mxu0 %v1434
    %1462 = vmatprep.subr.mxu0 0.0
    %1463 = vmatpush1.msra.mxu0 %v1435
    %1464 = vmatprep.subr.mxu0 0.0
    %1465 = vmatpush1.msra.mxu0 %v1436
    %1466 = vmatprep.subr.mxu0 0.0
    %1467 = vmatpush1.msra.mxu0 %v1437
    %1468 = vmatprep.subr.mxu0 0.0
    %1469 = vmatpush1.msra.mxu0 %v1438
    %1470 = vmatprep.subr.mxu0 0.0
    %1471 = vmatpush1.msra.mxu0 %v1439
    %1472 = vmatprep.subr.mxu0 0.0
    %1473 = vmatpush1.msra.mxu0 %v1440
    %1474 = vmatprep.subr.mxu0 0.0
    %1475 = vmatpush1.msra.mxu0 %v1441
    %1476 = vmatprep.subr.mxu0 0.0
    %1477 = vmatpush1.msra.mxu0 %v1442
    %1478 = vmatprep.subr.mxu0 0.0
    %1479 = vmatpush1.msra.mxu0 %v1443
    %1480 = vmatprep.subr.mxu0 0.0
    %1481 = vmatpush1.msra.mxu0 %v1444
    %1482 = vmatprep.subr.mxu0 0.0
    %1483 = vmatpush1.msra.mxu0 0.0
    %1484 = vmatprep.subr.mxu0 0.0
    %1485 = vmatpush1.msra.mxu0 0.0
    %1486 = vmatprep.subr.mxu0 0.0
    %1487 = vmatpush1.msra.mxu0 0.0
    %1488 = vmatprep.subr.mxu0 0.0
    %1489 = vmatpush1.msra.mxu0 0.0
    %1490 = vmatprep.subr.mxu0 0.0
    %1491 = vmatpush1.msra.mxu0 0.0
    %1492 = vmatprep.subr.mxu0 0.0
    %1493 = vmatpush1.msra.mxu0 0.0
    %1494 = vmatprep.subr.mxu0 0.0
    %1495 = vmatpush1.msra.mxu0 0.0
    %1496 = vmatprep.subr.mxu0 0.0
    %1497 = vmatpush1.msra.mxu0 0.0
    %1498 = vmatprep.subr.mxu0 0.0
    %1499 = vmatpush1.msra.mxu0 0.0
    %1500 = vmatprep.subr.mxu0 0.0
    %1501 = vmatpush1.msra.mxu0 0.0
    %1502 = vmatprep.subr.mxu0 0.0
    %1503 = vmatpush1.msra.mxu0 0.0
    %1504 = vmatprep.subr.mxu0 0.0
    %1505 = vmatpush1.msra.mxu0 0.0
    %1506 = vmatprep.subr.mxu0 0.0
    %1507 = vmatpush1.msra.mxu0 0.0
    %1508 = vmatprep.subr.mxu0 0.0
    %1509 = vmatpush1.msra.mxu0 0.0
    %1510 = vmatprep.subr.mxu0 0.0
    %1511 = vmatpush1.msra.mxu0 0.0
    %1512 = vmatprep.subr.mxu0 0.0
    %1513 = vmatpush1.msra.mxu0 0.0
    %1514 = vmatprep.mubr.f32.mxu0 0.0
    %1515 = vmatmul.mubr.f32.gmra.mrb[0].mxu0 %v1427
    %v1516 = vpop.f32.mrb[0].mxu0
    %v1517 = vadd.f32 %v1449, %v1516
    %v1518 = vpop.f32.mrb[0].mxu0
    %1519 = vdwg.mxu0
    %v1520 = vmax.f32 %v1517, 0.0
    %s1521 = scalar_lea.vmem [#allocation5], 896
    %v1522 = vld [vmem:[%s1521] sm:$0xff]
    %v1523 = vld [vmem:[%s1521 + $0x8] sm:$0xff]
    %v1524 = vld [vmem:[%s1521 + $0x10] sm:$0xff]
    %v1525 = vld [vmem:[%s1521 + $0x18] sm:$0xff]
    %v1526 = vld [vmem:[%s1521 + $0x20] sm:$0xff]
    %v1527 = vld [vmem:[%s1521 + $0x28] sm:$0xff]
    %v1528 = vld [vmem:[%s1521 + $0x30] sm:$0xff]
    %v1529 = vld [vmem:[%s1521 + $0x38] sm:$0xff]
    %v1530 = vld [vmem:[%s1521 + $0x40] sm:$0xff]
    %v1531 = vld [vmem:[%s1521 + $0x48] sm:$0xff]
    %v1532 = vld [vmem:[%s1521 + $0x50] sm:$0xff]
    %v1533 = vld [vmem:[%s1521 + $0x58] sm:$0xff]
    %v1534 = vld [vmem:[%s1521 + $0x60] sm:$0xff]
    %v1535 = vld [vmem:[%s1521 + $0x68] sm:$0xff]
    %v1536 = vld [vmem:[%s1521 + $0x70] sm:$0xff]
    %v1537 = vld [vmem:[%s1521 + $0x78] sm:$0xff]
    %v1538 = vld [vmem:[%s4 + $0x7] sm:$0x1]
    %v1539 = vlaneseq
    %v1540 = vshrl.u32 %v1539, 7
    %v1541 = vsub.s32 0, %v1540
    %v1542 = vrot.slane %v1538, %v1541
    %1543 = vmatprep.subr.mxu0 0.0
    %1544 = vmatpush1.msra.mxu0 %v1522
    %1545 = vmatprep.subr.mxu0 0.0
    %1546 = vmatpush1.msra.mxu0 %v1523
    %1547 = vmatprep.subr.mxu0 0.0
    %1548 = vmatpush1.msra.mxu0 %v1524
    %1549 = vmatprep.subr.mxu0 0.0
    %1550 = vmatpush1.msra.mxu0 %v1525
    %1551 = vmatprep.subr.mxu0 0.0
    %1552 = vmatpush1.msra.mxu0 %v1526
    %1553 = vmatprep.subr.mxu0 0.0
    %1554 = vmatpush1.msra.mxu0 %v1527
    %1555 = vmatprep.subr.mxu0 0.0
    %1556 = vmatpush1.msra.mxu0 %v1528
    %1557 = vmatprep.subr.mxu0 0.0
    %1558 = vmatpush1.msra.mxu0 %v1529
    %1559 = vmatprep.subr.mxu0 0.0
    %1560 = vmatpush1.msra.mxu0 %v1530
    %1561 = vmatprep.subr.mxu0 0.0
    %1562 = vmatpush1.msra.mxu0 %v1531
    %1563 = vmatprep.subr.mxu0 0.0
    %1564 = vmatpush1.msra.mxu0 %v1532
    %1565 = vmatprep.subr.mxu0 0.0
    %1566 = vmatpush1.msra.mxu0 %v1533
    %1567 = vmatprep.subr.mxu0 0.0
    %1568 = vmatpush1.msra.mxu0 %v1534
    %1569 = vmatprep.subr.mxu0 0.0
    %1570 = vmatpush1.msra.mxu0 %v1535
    %1571 = vmatprep.subr.mxu0 0.0
    %1572 = vmatpush1.msra.mxu0 %v1536
    %1573 = vmatprep.subr.mxu0 0.0
    %1574 = vmatpush1.msra.mxu0 %v1537
    %1575 = vmatprep.subr.mxu0 0.0
    %1576 = vmatpush1.msra.mxu0 0.0
    %1577 = vmatprep.subr.mxu0 0.0
    %1578 = vmatpush1.msra.mxu0 0.0
    %1579 = vmatprep.subr.mxu0 0.0
    %1580 = vmatpush1.msra.mxu0 0.0
    %1581 = vmatprep.subr.mxu0 0.0
    %1582 = vmatpush1.msra.mxu0 0.0
    %1583 = vmatprep.subr.mxu0 0.0
    %1584 = vmatpush1.msra.mxu0 0.0
    %1585 = vmatprep.subr.mxu0 0.0
    %1586 = vmatpush1.msra.mxu0 0.0
    %1587 = vmatprep.subr.mxu0 0.0
    %1588 = vmatpush1.msra.mxu0 0.0
    %1589 = vmatprep.subr.mxu0 0.0
    %1590 = vmatpush1.msra.mxu0 0.0
    %1591 = vmatprep.subr.mxu0 0.0
    %1592 = vmatpush1.msra.mxu0 0.0
    %1593 = vmatprep.subr.mxu0 0.0
    %1594 = vmatpush1.msra.mxu0 0.0
    %1595 = vmatprep.subr.mxu0 0.0
    %1596 = vmatpush1.msra.mxu0 0.0
    %1597 = vmatprep.subr.mxu0 0.0
    %1598 = vmatpush1.msra.mxu0 0.0
    %1599 = vmatprep.subr.mxu0 0.0
    %1600 = vmatpush1.msra.mxu0 0.0
    %1601 = vmatprep.subr.mxu0 0.0
    %1602 = vmatpush1.msra.mxu0 0.0
    %1603 = vmatprep.subr.mxu0 0.0
    %1604 = vmatpush1.msra.mxu0 0.0
    %1605 = vmatprep.subr.mxu0 0.0
    %1606 = vmatpush1.msra.mxu0 0.0
    %1607 = vmatprep.mubr.f32.mxu0 0.0
    %1608 = vmatmul.mubr.f32.gmra.mrb[0].mxu0 %v1520
    %v1609 = vpop.f32.mrb[0].mxu0
    %v1610 = vadd.f32 %v1542, %v1609
    %v1611 = vpop.f32.mrb[0].mxu0
    %1612 = vdwg.mxu0
    %1613 = vst [vmem:[#allocation7] sm:$0xff] %v1610
    // Predicated region
    $region30: #{tpu_custom_call.1} parent=1 // pred_check
      _
    $region31: #{tpu_custom_call.1} parent=1 // pred_check_branch
      %1615 = sbr.rel (0) target = $region33
    $region32: #{tpu_custom_call.1} parent=1 // pred_region
      %s1617 = ssub.s32 128, 128
      %1618 = vsyncadd [#allocation4], %s1617
      %s1620 = sshll.u32 [#allocation7], 4
      %s1621 = int_to_ptr.vmem [resolvable:$true] %s1620
      %1623 = dma.vmem_to_hbm [thread:$0]  %s1621, 128, %s5, [#allocation4]
    $region33: #{tpu_custom_call.1} parent=1 // pred_fallthru
      _
    // Predicated region
    $region34: #{tpu_custom_call.1} parent=1 // pred_check
      _
    $region35: #{tpu_custom_call.1} parent=1 // pred_check_branch
      %1625 = sbr.rel (0) target = $region37
    $region36: #{tpu_custom_call.1} parent=1 // pred_region
      %1626 = dma.done [#allocation4], 128
    $region37: #{tpu_custom_call.1} parent=1 // pred_fallthru
      _
    %1627 = vsyncpa [#allocation3], 1
    %1628 = vsyncpa [#allocation6], 1
    %1629 = vsyncpa [#allocation4], 1

</llo_original>
